<compile_context>
chip_gen: v5e
topology: v5e:2x2
jax: 0.10.0
libtpu: 0.0.40
codegen_flags: <defaults>
</compile_context>

<pallas_src>
import functools

import jax
import jax.numpy as jnp
import numpy as np
from jax.experimental import pallas as pl
from jax.experimental.pallas import tpu as pltpu


def _cdiv(a, b):
    return -(-a // b)


def _round_up(x, m):
    return _cdiv(x, m) * m


def _feat_encode_kernel(xp_ref, wtime_ref, wxp_ref, wt_even_ref, wt_odd_ref,
                        bias_ref, o_ref, *, feat_dims):
    # xp_ref     : (tn2, 2*(feat_dims+1))  two edges packed per physical row:
    #              [ feats_even | ts_even | feats_odd | ts_odd ]
    # wtime_ref  : (1, time_dims)          TimeEncode weight (transposed, bias=0)
    # wxp_ref    : (2*(feat_dims+1), 2*O)  block-diagonal edge-feature weight
    #              (the ts columns hit all-zero weight rows)
    # wt_even_ref: (time_dims, 2*O)        time-feature weight -> lanes [0, O)
    # wt_odd_ref : (time_dims, 2*O)        time-feature weight -> lanes [O, 2O)
    # bias_ref   : (1, 2*O)                bias duplicated for both halves
    # o_ref      : (tn2, 2*O)              two output rows packed per row
    xp = xp_ref[...]
    stride = feat_dims + 1
    ts_even = xp[:, feat_dims:feat_dims + 1].astype(jnp.float32)          # (tn2, 1)
    ts_odd = xp[:, stride + feat_dims:stride + feat_dims + 1].astype(jnp.float32)
    wtime = wtime_ref[...]                                                # (1, T)
    time_even = jnp.cos(ts_even * wtime)                                  # (tn2, T) f32
    time_odd = jnp.cos(ts_odd * wtime)

    # Three MXU passes, f32 accumulation; lane-dense (tn2, 2*O) result, no
    # concat / reshape relayouts anywhere.
    acc = jnp.dot(xp, wxp_ref[...], preferred_element_type=jnp.float32)
    acc = acc + jnp.dot(time_even, wt_even_ref[...], preferred_element_type=jnp.float32)
    acc = acc + jnp.dot(time_odd, wt_odd_ref[...], preferred_element_type=jnp.float32)
    o_ref[...] = (acc + bias_ref[...]).astype(o_ref.dtype)


def _pick_packed_tile(m_rows, requested_packed, in_itemsize, out_itemsize):
    """Tile size in *packed* rows (2 edges / row), multiple of 8.

    VMEM accounting uses lane-padded widths (every block pads its last dim to
    128 lanes):
      input  (double-buffered): 2 * 128 * in_itemsize   bytes / packed row
      output (double-buffered): 2 * 128 * out_itemsize  bytes / packed row
      f32 temps (time_even, time_odd, acc, slack): 4 * 128 * 4
    A 16 MiB working budget keeps the footprint under every generation's
    default scoped-VMEM limit (we additionally raise the limit to 32 MiB).
    """
    per_row = 2 * 128 * in_itemsize + 2 * 128 * out_itemsize + 4 * 128 * 4
    cap = max(8, ((16 * 1024 * 1024) // per_row) // 8 * 8)
    # Keep >= 2 grid steps when the problem allows, so both v7x cores get work.
    half = max(8, _round_up(_cdiv(m_rows, 2), 8))
    req = max(8, (requested_packed // 8) * 8)
    return max(8, min(req, cap, half))


@functools.partial(jax.jit, static_argnames=("tile_rows", "in_dtype", "out_dtype"))
def feat_encode(edge_feats, edge_ts, w_time, w_fe_t, b_fe, *,
                tile_rows=4096, in_dtype=jnp.float32, out_dtype=jnp.float32):
    """FeatEncode forward.  tile_rows is in logical edges (2 edges / packed row)."""
    N, F = edge_feats.shape
    T = w_time.shape[-1]
    in_dims, O = w_fe_t.shape
    assert in_dims == F + T

    feats = edge_feats.astype(in_dtype)
    ts = edge_ts.reshape(N, 1).astype(in_dtype)

    # Fold ts into the feature stream (single dense input DMA) and pack two
    # edges per physical row.  (N,F)+(N,1) -> (N,F+1) is one materialization
    # pass; the (N,F+1) -> (M, 2F+2) reshape is a free row-major bitcast.
    x = jnp.concatenate([feats, ts], axis=1)                 # (N, F+1)
    if N % 2:
        x = jnp.pad(x, ((0, 1), (0, 0)))                     # only in the odd-N case
    M = x.shape[0] // 2
    xp = x.reshape(M, 2 * (F + 1))                           # (M, 2F+2)

    # Packed weights (tiny; built once per call).
    w_time2 = w_time.reshape(1, T).astype(jnp.float32)
    wf = w_fe_t[:F].astype(jnp.float32)                      # (F, O)
    wt = w_fe_t[F:].astype(jnp.float32)                      # (T, O)
    zf = jnp.zeros((F, O), jnp.float32)
    z1 = jnp.zeros((1, O), jnp.float32)
    zt = jnp.zeros((T, O), jnp.float32)
    # [feats_even|ts_even|feats_odd|ts_odd] @ wxp -> [out_even | out_odd]
    wxp = jnp.concatenate([
        jnp.concatenate([wf, zf], axis=1),                   # feats_even -> lanes [0,O)
        jnp.concatenate([z1, z1], axis=1),                   # ts_even    -> 0
        jnp.concatenate([zf, wf], axis=1),                   # feats_odd  -> lanes [O,2O)
        jnp.concatenate([z1, z1], axis=1),                   # ts_odd     -> 0
    ], axis=0)                                               # (2F+2, 2O)
    wt_even = jnp.concatenate([wt, zt], axis=1)              # (T, 2O)
    wt_odd = jnp.concatenate([zt, wt], axis=1)               # (T, 2O)
    bias2 = jnp.tile(b_fe.reshape(1, O).astype(jnp.float32), (1, 2))   # (1, 2O)

    in_it = jnp.dtype(in_dtype).itemsize
    out_it = jnp.dtype(out_dtype).itemsize
    tn2 = _pick_packed_tile(M, max(8, tile_rows // 2), in_it, out_it)
    grid = (_cdiv(M, tn2),)

    cost = pl.CostEstimate(
        flops=2 * (2 * M) * (F + T) * O,
        transcendentals=(2 * M) * T,
        bytes_accessed=(M * 2 * (F + 1) * in_it + M * 2 * O * out_it
                        + (wxp.size + wt_even.size + wt_odd.size
                           + bias2.size + T) * 4),
    )

    out_packed = pl.pallas_call(
        functools.partial(_feat_encode_kernel, feat_dims=F),
        out_shape=jax.ShapeDtypeStruct((M, 2 * O), out_dtype),
        grid_spec=pltpu.PrefetchScalarGridSpec(
            num_scalar_prefetch=0,
            grid=grid,
            in_specs=[
                pl.BlockSpec((tn2, 2 * (F + 1)), lambda i: (i, 0)),
                pl.BlockSpec((1, T), lambda i: (0, 0)),
                pl.BlockSpec((2 * (F + 1), 2 * O), lambda i: (0, 0)),
                pl.BlockSpec((T, 2 * O), lambda i: (0, 0)),
                pl.BlockSpec((T, 2 * O), lambda i: (0, 0)),
                pl.BlockSpec((1, 2 * O), lambda i: (0, 0)),
            ],
            out_specs=pl.BlockSpec((tn2, 2 * O), lambda i: (i, 0)),
        ),
        compiler_params=pltpu.CompilerParams(
            dimension_semantics=("parallel",),
            vmem_limit_bytes=32 * 1024 * 1024),
        cost_estimate=cost,
    )(xp, w_time2, wxp, wt_even, wt_odd, bias2)

    # (M, 2O) -> (2M, O) is a free row-major reshape; slice off the odd-N pad row.
    return out_packed.reshape(2 * M, O)[:N]


def make_params(time_dims, feat_dims, out_dims, key):
    # TimeEncode: fixed (non-trainable) weight 1 / 10**linspace(0, 9, dim), bias 0.
    w_time = (1.0 / 10 ** np.linspace(0, 9, time_dims, dtype=np.float32))
    w_time = jnp.asarray(w_time, jnp.float32).reshape(1, time_dims)

    # feat_encoder = nn.Linear(time_dims + feat_dims, out_dims), PyTorch-style
    # uniform init with bound 1/sqrt(fan_in).  Weight stored transposed
    # (in_dims, out_dims) with rows ordered to match concat [edge_feats | time_feats].
    in_dims = time_dims + feat_dims
    bound = 1.0 / np.sqrt(in_dims)
    k_w, k_b = jax.random.split(key)
    w_fe_t = jax.random.uniform(k_w, (in_dims, out_dims), jnp.float32, -bound, bound)
    b_fe = jax.random.uniform(k_b, (1, out_dims), jnp.float32, -bound, bound)
    return w_time, w_fe_t, b_fe


def reference(edge_feats, edge_ts, w_time, w_full, bias):
    time_feat = jnp.cos(edge_ts.reshape(-1, 1) * w_time)
    x = jnp.concatenate([edge_feats, time_feat], axis=1)
    return x @ w_full + bias


if __name__ == "__main__":
    # Small deterministic example; ragged N exercises the partial-tail-block path.
    N, feat_dims, time_dims, out_dims = 250, 32, 32, 64

    key = jax.random.PRNGKey(0)
    k_f, k_t, k_p = jax.random.split(key, 3)
    edge_feats = jax.random.normal(k_f, (N, feat_dims), jnp.float32)
    edge_ts = jax.random.uniform(k_t, (N,), jnp.float32, 0.0, 1000.0)

    w_time, w_fe_t, b_fe = make_params(time_dims, feat_dims, out_dims, k_p)

    # Exact (float32) path.
    out = jax.block_until_ready(feat_encode(edge_feats, edge_ts, w_time, w_fe_t, b_fe))
    ref = reference(edge_feats, edge_ts, w_time, w_fe_t, b_fe)
    np.testing.assert_allclose(np.asarray(out), np.asarray(ref), rtol=1e-5, atol=1e-5)

    # Bandwidth-optimized bf16-output path (f32 accumulation, cast at the store).
    out_bf16 = jax.block_until_ready(
        feat_encode(edge_feats, edge_ts, w_time, w_fe_t, b_fe, out_dtype=jnp.bfloat16))
    np.testing.assert_allclose(np.asarray(out_bf16.astype(jnp.float32)),
                               np.asarray(ref), rtol=2e-2, atol=2e-2)

    print("KERNEL_OK")
</pallas_src>

<mosaic_0001>
module attributes {stable_mosaic.version = 11 : i64} {
  func.func @_feat_encode_kernel(%arg0: i32, %arg1: memref<64x66xf32, #tpu.memory_space<vmem>>, %arg2: memref<1x32xf32, #tpu.memory_space<vmem>>, %arg3: memref<66x128xf32, #tpu.memory_space<vmem>>, %arg4: memref<32x128xf32, #tpu.memory_space<vmem>>, %arg5: memref<32x128xf32, #tpu.memory_space<vmem>>, %arg6: memref<1x128xf32, #tpu.memory_space<vmem>>, %arg7: memref<64x128xf32, #tpu.memory_space<vmem>>) attributes {dimension_semantics = [#tpu.dimension_semantics<parallel>], iteration_bounds = array<i64: 2>, scalar_prefetch = 0 : i64, scratch_operands = 0 : i64, tpu.core_type = #tpu.core_type<tc>, window_params = [{transform_indices = @transform_0, window_bounds = array<i64: 64, 66>}, {pipeline_mode = #tpu.pipeline_mode<synchronous>, transform_indices = @transform_1, window_bounds = array<i64: 1, 32>}, {pipeline_mode = #tpu.pipeline_mode<synchronous>, transform_indices = @transform_2, window_bounds = array<i64: 66, 128>}, {pipeline_mode = #tpu.pipeline_mode<synchronous>, transform_indices = @transform_3, window_bounds = array<i64: 32, 128>}, {pipeline_mode = #tpu.pipeline_mode<synchronous>, transform_indices = @transform_4, window_bounds = array<i64: 32, 128>}, {pipeline_mode = #tpu.pipeline_mode<synchronous>, transform_indices = @transform_5, window_bounds = array<i64: 1, 128>}, {transform_indices = @transform_6, window_bounds = array<i64: 64, 128>}]} {
    %c0 = arith.constant 0 : index
    %c0_0 = arith.constant 0 : index
    %0 = vector.load %arg1[%c0, %c0_0] : memref<64x66xf32, #tpu.memory_space<vmem>>, vector<64x66xf32>
    %1 = vector.extract_strided_slice %0 {offsets = [0, 32], sizes = [64, 1], strides = [1, 1]} : vector<64x66xf32> to vector<64x1xf32>
    %2 = vector.extract_strided_slice %0 {offsets = [0, 65], sizes = [64, 1], strides = [1, 1]} : vector<64x66xf32> to vector<64x1xf32>
    %c0_1 = arith.constant 0 : index
    %c0_2 = arith.constant 0 : index
    %3 = vector.load %arg2[%c0_1, %c0_2] : memref<1x32xf32, #tpu.memory_space<vmem>>, vector<1x32xf32>
    %4 = vector.broadcast %1 : vector<64x1xf32> to vector<64x32xf32>
    %5 = vector.broadcast %3 : vector<1x32xf32> to vector<64x32xf32>
    %6 = arith.mulf %4, %5 : vector<64x32xf32>
    %7 = math.cos %6 : vector<64x32xf32>
    %8 = vector.broadcast %2 : vector<64x1xf32> to vector<64x32xf32>
    %9 = vector.broadcast %3 : vector<1x32xf32> to vector<64x32xf32>
    %10 = arith.mulf %8, %9 : vector<64x32xf32>
    %11 = math.cos %10 : vector<64x32xf32>
    %c0_3 = arith.constant 0 : index
    %c0_4 = arith.constant 0 : index
    %12 = vector.load %arg3[%c0_3, %c0_4] : memref<66x128xf32, #tpu.memory_space<vmem>>, vector<66x128xf32>
    %cst = arith.constant dense<0.000000e+00> : vector<64x128xf32>
    %13 = tpu.matmul %0, %12, %cst {dimension_numbers = #tpu.dot_dimension_numbers<[1], [0], [0], [1], [0, 0, 1, 1], [], []>} : vector<64x66xf32>, vector<66x128xf32>, vector<64x128xf32> -> vector<64x128xf32>
    %c0_5 = arith.constant 0 : index
    %c0_6 = arith.constant 0 : index
    %14 = vector.load %arg4[%c0_5, %c0_6] : memref<32x128xf32, #tpu.memory_space<vmem>>, vector<32x128xf32>
    %cst_7 = arith.constant dense<0.000000e+00> : vector<64x128xf32>
    %15 = tpu.matmul %7, %14, %cst_7 {dimension_numbers = #tpu.dot_dimension_numbers<[1], [0], [0], [1], [0, 0, 1, 1], [], []>} : vector<64x32xf32>, vector<32x128xf32>, vector<64x128xf32> -> vector<64x128xf32>
    %16 = arith.addf %13, %15 : vector<64x128xf32>
    %c0_8 = arith.constant 0 : index
    %c0_9 = arith.constant 0 : index
    %17 = vector.load %arg5[%c0_8, %c0_9] : memref<32x128xf32, #tpu.memory_space<vmem>>, vector<32x128xf32>
    %cst_10 = arith.constant dense<0.000000e+00> : vector<64x128xf32>
    %18 = tpu.matmul %11, %17, %cst_10 {dimension_numbers = #tpu.dot_dimension_numbers<[1], [0], [0], [1], [0, 0, 1, 1], [], []>} : vector<64x32xf32>, vector<32x128xf32>, vector<64x128xf32> -> vector<64x128xf32>
    %19 = arith.addf %16, %18 : vector<64x128xf32>
    %c0_11 = arith.constant 0 : index
    %c0_12 = arith.constant 0 : index
    %20 = vector.load %arg6[%c0_11, %c0_12] : memref<1x128xf32, #tpu.memory_space<vmem>>, vector<1x128xf32>
    %21 = vector.broadcast %20 : vector<1x128xf32> to vector<64x128xf32>
    %22 = arith.addf %19, %21 : vector<64x128xf32>
    %c0_13 = arith.constant 0 : index
    %c0_14 = arith.constant 0 : index
    %23 = vector.load %arg7[%c0_13, %c0_14] : memref<64x128xf32, #tpu.memory_space<vmem>>, vector<64x128xf32>
    tpu.vector_store %arg7[%c0_13, %c0_14], %22 {strides = array<i32>} : memref<64x128xf32, #tpu.memory_space<vmem>>, vector<64x128xf32>,
    return
  }
  func.func @transform_0(%arg0: i32) -> (i32, i32) {
    %c0_i32 = arith.constant 0 : i32
    %c0_i32_0 = arith.constant 0 : i32
    return %arg0, %c0_i32 : i32, i32
  }
  func.func @transform_1(%arg0: i32) -> (i32, i32) {
    %c0_i32 = arith.constant 0 : i32
    %c0_i32_0 = arith.constant 0 : i32
    %c0_i32_1 = arith.constant 0 : i32
    return %c0_i32, %c0_i32_0 : i32, i32
  }
  func.func @transform_2(%arg0: i32) -> (i32, i32) {
    %c0_i32 = arith.constant 0 : i32
    %c0_i32_0 = arith.constant 0 : i32
    %c0_i32_1 = arith.constant 0 : i32
    return %c0_i32, %c0_i32_0 : i32, i32
  }
  func.func @transform_3(%arg0: i32) -> (i32, i32) {
    %c0_i32 = arith.constant 0 : i32
    %c0_i32_0 = arith.constant 0 : i32
    %c0_i32_1 = arith.constant 0 : i32
    return %c0_i32, %c0_i32_0 : i32, i32
  }
  func.func @transform_4(%arg0: i32) -> (i32, i32) {
    %c0_i32 = arith.constant 0 : i32
    %c0_i32_0 = arith.constant 0 : i32
    %c0_i32_1 = arith.constant 0 : i32
    return %c0_i32, %c0_i32_0 : i32, i32
  }
  func.func @transform_5(%arg0: i32) -> (i32, i32) {
    %c0_i32 = arith.constant 0 : i32
    %c0_i32_0 = arith.constant 0 : i32
    %c0_i32_1 = arith.constant 0 : i32
    return %c0_i32, %c0_i32_0 : i32, i32
  }
  func.func @transform_6(%arg0: i32) -> (i32, i32) {
    %c0_i32 = arith.constant 0 : i32
    %c0_i32_0 = arith.constant 0 : i32
    return %arg0, %c0_i32 : i32, i32
  }
}

</mosaic_0001>

<llo_original>
// kernel: feat_encode.1
$region0: #{feat_encode.1}
  #allocation0 [shape = 'u32[]', space=smem, size = 0x4, offset = 0x4, fixed_abs, tag = 'smem constant byte address 0x4 - core index']
  #allocation1 [shape = 'u32[72,128]{1,0:T(1,128)}', space=vmem, size = 0x9000, scoped, tag = 'internal scratch']
  %s0 = inlined_call_operand.vmem [shape: f32[125,66], index: 0, kind: input, shape index: {}]
  %s1 = inlined_call_operand.vmem [shape: f32[1,32], index: 1, kind: input, shape index: {}]
  %s2 = inlined_call_operand.vmem [shape: f32[66,128], index: 2, kind: input, shape index: {}]
  %s3 = inlined_call_operand.vmem [shape: f32[32,128], index: 3, kind: input, shape index: {}]
  %s4 = inlined_call_operand.vmem [shape: f32[32,128], index: 4, kind: input, shape index: {}]
  %s5 = inlined_call_operand.vmem [shape: f32[1,128], index: 5, kind: input, shape index: {}]
  %s6 = inlined_call_operand.vmem [shape: f32[125,128], index: 6, kind: output, shape index: {}]
  %s7 = sld [smem:[#allocation0]]
  $region57: #{feat_encode.1} parent=0
    _
  %s9 = ssub.s32 1, %s7
  %s10 = scalar_select 0, %s9, %s7
  loop: start=0, step=1, limit=4
  $region2: #{feat_encode.1} parent=0 // loop_pre_header
    _
  $region3: #{feat_encode.1} parent=0 // loop_header
    %s12 = sphi 0, %s16
    %p13 = scmp.ge.s32.totalorder %s12, 4
    %s22 = sphi 0, %s24
    %s25 = sphi 0, %s22
    %s26 = sphi 0, %s25
    %s42 = sphi 0, %s26
    %s46 = sphi 0, %s46
    %s48 = sphi 0, %s46
    %s49 = sphi 0, %s48
    %s63 = sphi 0, %s49
    %s67 = sphi 0, %s67
    %s69 = sphi 0, %s67
    %s70 = sphi 0, %s69
    %s84 = sphi 0, %s70
    %s88 = sphi 0, %s88
    %s90 = sphi 0, %s88
    %s91 = sphi 0, %s90
    %s105 = sphi 0, %s91
    %s109 = sphi 0, %s109
    %s111 = sphi 0, %s109
    %s112 = sphi 0, %s111
    %s126 = sphi 0, %s112
    %s130 = sphi 0, %s130
    %s132 = sphi 0, %s130
    %s133 = sphi 0, %s132
    %s147 = sphi 0, %s133
    %s153 = sphi 0, %s155
    %s156 = sphi 0, %s153
    %s157 = sphi 0, %s156
    %s173 = sphi 0, %s157
  $region4: #{feat_encode.1} parent=0 // loop_header_branch
    %15 = sbr.rel (%p13) target = $region8
  $region5: #{feat_encode.1} parent=0 // loop_body
    %s17 = ssub.s32 %s12, 1
    %s18 = ssub.s32 %s12, 2
    %s19 = sadd.s32 %s12, 1
    %s20 = ssub.s32 %s12, %s19
    %p21 = scmp.eq.s32.totalorder %s20, 0
    %s23 = sadd.s32 %s22, 1
    %s24 = scalar_select %p21, %s22, %s23
    %p27 = pneg %p21
    %p28 = scmp.eq.s32.totalorder %s12, 1
    %p29 = por %p27, %p28
    %p30 = scmp.ne.s32.totalorder %s22, %s25
    %p31 = scmp.eq.s32.totalorder %s12, 0
    %p32 = por %p30, %p31
    %p33 = scmp.ne.s32.totalorder %s22, %s25
    %p34 = scmp.eq.s32.totalorder %s17, 1
    %p35 = por %p33, %p34
    %p36 = scmp.ne.s32.totalorder %s25, %s26
    %p37 = scmp.eq.s32.totalorder %s17, 0
    %p38 = por %p36, %p37
    %p39 = scmp.ne.s32.totalorder %s25, %s26
    %p40 = scmp.eq.s32.totalorder %s18, 1
    %p41 = por %p39, %p40
    %p43 = scmp.ne.s32.totalorder %s26, %s42
    %p44 = scmp.eq.s32.totalorder %s18, 0
    %p45 = por %p43, %p44
    %s47 = sadd.s32 %s46, 1
    %p50 = scmp.eq.s32.totalorder %s12, 1
    %p51 = scmp.ne.s32.totalorder %s46, %s48
    %p52 = scmp.eq.s32.totalorder %s12, 0
    %p53 = por %p51, %p52
    %p54 = scmp.ne.s32.totalorder %s46, %s48
    %p55 = scmp.eq.s32.totalorder %s17, 1
    %p56 = por %p54, %p55
    %p57 = scmp.ne.s32.totalorder %s48, %s49
    %p58 = scmp.eq.s32.totalorder %s17, 0
    %p59 = por %p57, %p58
    %p60 = scmp.ne.s32.totalorder %s48, %s49
    %p61 = scmp.eq.s32.totalorder %s18, 1
    %p62 = por %p60, %p61
    %p64 = scmp.ne.s32.totalorder %s49, %s63
    %p65 = scmp.eq.s32.totalorder %s18, 0
    %p66 = por %p64, %p65
    %s68 = sadd.s32 %s67, 1
    %p71 = scmp.eq.s32.totalorder %s12, 1
    %p72 = scmp.ne.s32.totalorder %s67, %s69
    %p73 = scmp.eq.s32.totalorder %s12, 0
    %p74 = por %p72, %p73
    %p75 = scmp.ne.s32.totalorder %s67, %s69
    %p76 = scmp.eq.s32.totalorder %s17, 1
    %p77 = por %p75, %p76
    %p78 = scmp.ne.s32.totalorder %s69, %s70
    %p79 = scmp.eq.s32.totalorder %s17, 0
    %p80 = por %p78, %p79
    %p81 = scmp.ne.s32.totalorder %s69, %s70
    %p82 = scmp.eq.s32.totalorder %s18, 1
    %p83 = por %p81, %p82
    %p85 = scmp.ne.s32.totalorder %s70, %s84
    %p86 = scmp.eq.s32.totalorder %s18, 0
    %p87 = por %p85, %p86
    %s89 = sadd.s32 %s88, 1
    %p92 = scmp.eq.s32.totalorder %s12, 1
    %p93 = scmp.ne.s32.totalorder %s88, %s90
    %p94 = scmp.eq.s32.totalorder %s12, 0
    %p95 = por %p93, %p94
    %p96 = scmp.ne.s32.totalorder %s88, %s90
    %p97 = scmp.eq.s32.totalorder %s17, 1
    %p98 = por %p96, %p97
    %p99 = scmp.ne.s32.totalorder %s90, %s91
    %p100 = scmp.eq.s32.totalorder %s17, 0
    %p101 = por %p99, %p100
    %p102 = scmp.ne.s32.totalorder %s90, %s91
    %p103 = scmp.eq.s32.totalorder %s18, 1
    %p104 = por %p102, %p103
    %p106 = scmp.ne.s32.totalorder %s91, %s105
    %p107 = scmp.eq.s32.totalorder %s18, 0
    %p108 = por %p106, %p107
    %s110 = sadd.s32 %s109, 1
    %p113 = scmp.eq.s32.totalorder %s12, 1
    %p114 = scmp.ne.s32.totalorder %s109, %s111
    %p115 = scmp.eq.s32.totalorder %s12, 0
    %p116 = por %p114, %p115
    %p117 = scmp.ne.s32.totalorder %s109, %s111
    %p118 = scmp.eq.s32.totalorder %s17, 1
    %p119 = por %p117, %p118
    %p120 = scmp.ne.s32.totalorder %s111, %s112
    %p121 = scmp.eq.s32.totalorder %s17, 0
    %p122 = por %p120, %p121
    %p123 = scmp.ne.s32.totalorder %s111, %s112
    %p124 = scmp.eq.s32.totalorder %s18, 1
    %p125 = por %p123, %p124
    %p127 = scmp.ne.s32.totalorder %s112, %s126
    %p128 = scmp.eq.s32.totalorder %s18, 0
    %p129 = por %p127, %p128
    %s131 = sadd.s32 %s130, 1
    %p134 = scmp.eq.s32.totalorder %s12, 1
    %p135 = scmp.ne.s32.totalorder %s130, %s132
    %p136 = scmp.eq.s32.totalorder %s12, 0
    %p137 = por %p135, %p136
    %p138 = scmp.ne.s32.totalorder %s130, %s132
    %p139 = scmp.eq.s32.totalorder %s17, 1
    %p140 = por %p138, %p139
    %p141 = scmp.ne.s32.totalorder %s132, %s133
    %p142 = scmp.eq.s32.totalorder %s17, 0
    %p143 = por %p141, %p142
    %p144 = scmp.ne.s32.totalorder %s132, %s133
    %p145 = scmp.eq.s32.totalorder %s18, 1
    %p146 = por %p144, %p145
    %p148 = scmp.ne.s32.totalorder %s133, %s147
    %p149 = scmp.eq.s32.totalorder %s18, 0
    %p150 = por %p148, %p149
    %s151 = ssub.s32 %s12, %s19
    %p152 = scmp.eq.s32.totalorder %s151, 0
    %s154 = sadd.s32 %s153, 1
    %s155 = scalar_select %p152, %s153, %s154
    %p158 = pneg %p152
    %p159 = scmp.eq.s32.totalorder %s12, 1
    %p160 = por %p158, %p159
    %p161 = scmp.ne.s32.totalorder %s153, %s156
    %p162 = scmp.eq.s32.totalorder %s12, 0
    %p163 = por %p161, %p162
    %p164 = scmp.ne.s32.totalorder %s153, %s156
    %p165 = scmp.eq.s32.totalorder %s17, 1
    %p166 = por %p164, %p165
    %p167 = scmp.ne.s32.totalorder %s156, %s157
    %p168 = scmp.eq.s32.totalorder %s17, 0
    %p169 = por %p167, %p168
    %p170 = scmp.ne.s32.totalorder %s156, %s157
    %p171 = scmp.eq.s32.totalorder %s18, 1
    %p172 = por %p170, %p171
    %p174 = scmp.ne.s32.totalorder %s157, %s173
    %p175 = scmp.eq.s32.totalorder %s18, 0
    %p176 = por %p174, %p175
    %p177 = scmp.le.s32.totalorder 1, %s12
    %p178 = scmp.lt.s32.totalorder %s12, 3
    %p179 = pnand %p177, %p178
    %p180 = pneg %p179
    // Predicated region
    $region9: #{feat_encode.1} parent=5 // pred_check
      _
    $region10: #{feat_encode.1} parent=5 // pred_check_branch
      %182 = sbr.rel (%p179) target = $region12
    $region11: #{feat_encode.1} parent=5 // pred_region
      %s183 = ssub.s32 %s12, 1
      // Predicated region
      $region13: #{feat_encode.1} parent=11 // pred_check
        %p184 = pneg %p59
      $region14: #{feat_encode.1} parent=11 // pred_check_branch
        %186 = sbr.rel (%p184) target = $region16
      $region15: #{feat_encode.1} parent=11 // pred_region
        _
      $region16: #{feat_encode.1} parent=11 // pred_fallthru
        _
      // Predicated region
      $region17: #{feat_encode.1} parent=11 // pred_check
        %p187 = pneg %p80
      $region18: #{feat_encode.1} parent=11 // pred_check_branch
        %189 = sbr.rel (%p187) target = $region20
      $region19: #{feat_encode.1} parent=11 // pred_region
        _
      $region20: #{feat_encode.1} parent=11 // pred_fallthru
        _
      // Predicated region
      $region21: #{feat_encode.1} parent=11 // pred_check
        %p190 = pneg %p101
      $region22: #{feat_encode.1} parent=11 // pred_check_branch
        %192 = sbr.rel (%p190) target = $region24
      $region23: #{feat_encode.1} parent=11 // pred_region
        _
      $region24: #{feat_encode.1} parent=11 // pred_fallthru
        _
      // Predicated region
      $region25: #{feat_encode.1} parent=11 // pred_check
        %p193 = pneg %p122
      $region26: #{feat_encode.1} parent=11 // pred_check_branch
        %195 = sbr.rel (%p193) target = $region28
      $region27: #{feat_encode.1} parent=11 // pred_region
        _
      $region28: #{feat_encode.1} parent=11 // pred_fallthru
        _
      // Predicated region
      $region29: #{feat_encode.1} parent=11 // pred_check
        %p196 = pneg %p143
      $region30: #{feat_encode.1} parent=11 // pred_check_branch
        %198 = sbr.rel (%p196) target = $region32
      $region31: #{feat_encode.1} parent=11 // pred_region
        _
      $region32: #{feat_encode.1} parent=11 // pred_fallthru
        _
    $region12: #{feat_encode.1} parent=5 // pred_fallthru
      _
    %p199 = scmp.lt.s32.totalorder %s12, 2
    // Predicated region
    $region33: #{feat_encode.1} parent=5 // pred_check
      %p200 = pneg %p199
    $region34: #{feat_encode.1} parent=5 // pred_check_branch
      %202 = sbr.rel (%p200) target = $region36
    $region35: #{feat_encode.1} parent=5 // pred_region
      // Predicated region
      $region37: #{feat_encode.1} parent=35 // pred_check
        %p203 = pneg %p32
      $region38: #{feat_encode.1} parent=35 // pred_check_branch
        %205 = sbr.rel (%p203) target = $region40
      $region39: #{feat_encode.1} parent=35 // pred_region
        %s206 = smul.u32 8, %s12
        %p207 = scmp.lt.s32.totalorder %s206, 15
        %s208 = scalar_select %p207, %s206, 15
        %s209 = smul.addr %s208, 8
        %s210 = scalar_lea.vmem %s0, %s209
        %s211 = smul.u32 8, %s12
      $region40: #{feat_encode.1} parent=35 // pred_fallthru
        _
    $region36: #{feat_encode.1} parent=5 // pred_fallthru
      _
    %p212 = scmp.le.s32.totalorder 1, %s12
    %p213 = scmp.lt.s32.totalorder %s12, 3
    %p214 = pnand %p212, %p213
    %p215 = pneg %p214
    // Predicated region
    $region41: #{feat_encode.1} parent=5 // pred_check
      _
    $region42: #{feat_encode.1} parent=5 // pred_check_branch
      %217 = sbr.rel (%p214) target = $region44
    $region43: #{feat_encode.1} parent=5 // pred_region
      %s218 = ssub.s32 %s12, 1
      %s219 = smul.u32 8, %s17
      %p220 = scmp.lt.s32.totalorder %s219, 15
      %s221 = scalar_select %p220, %s219, 15
      %s222 = smul.addr %s221, 8
      %s223 = scalar_lea.vmem %s0, %s222
      %p224 = pneg %p38
      %p225 = pneg %p35
      %p226 = pneg %p59
      %p227 = pneg %p56
      %p228 = pneg %p80
      %p229 = pneg %p77
      %p230 = pneg %p101
      %p231 = pneg %p98
      %p232 = pneg %p122
      %p233 = pneg %p119
      %p234 = pneg %p143
      %p235 = pneg %p140
      %p236 = pneg %p169
      %p237 = pneg %p166
      %s238 = smul.u32 8, %s17
      %p239 = scmp.lt.s32.totalorder %s238, 15
      %s240 = scalar_select %p239, %s238, 15
      %s241 = smul.addr %s240, 8
      %s242 = scalar_lea.vmem %s6, %s241
      %s243 = smul.u32 8, %s17
      %p244 = scmp.lt.s32.totalorder %s243, 15
      %s245 = scalar_select %p244, %s243, 15
      %s246 = smul.addr %s245, 8
      %s247 = scalar_lea.vmem %s0, %s246
      %s248 = smul.u32 8, %s17
      %s249 = smul.u32 8, %s17
      %p250 = scmp.lt.s32.totalorder %s249, 15
      %s251 = scalar_select %p250, %s249, 15
      %s252 = smul.addr %s251, 8
      %s253 = scalar_lea.vmem %s6, %s252
      %s254 = smul.u32 8, %s17
      %v255 = vld [vmem:[%s247] sm:$0xff]
      %v256 = vld [vmem:[%s247 + $0x8] sm:$0xff]
      %v257 = vld [vmem:[%s247 + $0x10] sm:$0xff]
      %v258 = vld [vmem:[%s247 + $0x18] sm:$0xff]
      %v259 = vld [vmem:[%s247 + $0x20] sm:$0xff]
      %v260 = vld [vmem:[%s247 + $0x28] sm:$0xff]
      %v261 = vld [vmem:[%s247 + $0x30] sm:$0xff]
      %v262 = vld [vmem:[%s247 + $0x38] sm:$0xff]
      %v263 = vld [vmem:[%s1] sm:$0x1]
      %265 = vset.pattern.permute.xlu0 32
      %266 = vperm.xlu0 %265, %v255
      %v267 = vpop.permute.xlu0 %266
      %270 = vset.pattern.permute.xlu0 32
      %271 = vperm.xlu0 %270, %v256
      %v272 = vpop.permute.xlu0 %271
      %275 = vset.pattern.permute.xlu0 32
      %276 = vperm.xlu0 %275, %v257
      %v277 = vpop.permute.xlu0 %276
      %280 = vset.pattern.permute.xlu0 32
      %281 = vperm.xlu0 %280, %v258
      %v282 = vpop.permute.xlu0 %281
      %285 = vset.pattern.permute.xlu0 32
      %286 = vperm.xlu0 %285, %v259
      %v287 = vpop.permute.xlu0 %286
      %290 = vset.pattern.permute.xlu0 32
      %291 = vperm.xlu0 %290, %v260
      %v292 = vpop.permute.xlu0 %291
      %295 = vset.pattern.permute.xlu0 32
      %296 = vperm.xlu0 %295, %v261
      %v297 = vpop.permute.xlu0 %296
      %300 = vset.pattern.permute.xlu0 32
      %301 = vperm.xlu0 %300, %v262
      %v302 = vpop.permute.xlu0 %301
      %v305 = vperm.slane %v263, 0
      %v307 = vmul.f32 %v267, %v305
      %v308 = vmul.f32 %v272, %v305
      %v309 = vmul.f32 %v277, %v305
      %v310 = vmul.f32 %v282, %v305
      %v311 = vmul.f32 %v287, %v305
      %v312 = vmul.f32 %v292, %v305
      %v313 = vmul.f32 %v297, %v305
      %v314 = vmul.f32 %v302, %v305
      %v315 = vand.u32 2147483647, %v307
      %vm316 = vcmp.le.f32.partialorder %v315, 0.7853982
      %vm317 = vcmp.lt.s32.totalorder %v307, 0
      %v318 = vand.u32 %v307, 2139095040
      %v319 = vshrl.u32 %v318, 23
      %v320 = vsub.s32 %v319, 127
      %v321 = vand.u32 2147483647, %v307
      %v322 = vand.u32 %v321, 8388607
      %v323 = vor.u32 %v322, 8388608
      %v324 = vsub.s32 0, %v323
      %v325 = vadd.s32 %v320, 1
      %vm326 = vcmp.gt.s32.totalorder %v325, 0
      %v327 = vsel %vm326, %v325, 0
      %v328 = vshrl.u32 %v327, 5
      %v329 = vand.u32 %v327, 31
      %v330 = vsub.s32 32, %v329
      %v331 = vshrl.u32 683565275, %v330
      %v332 = vshll.u32 683565275, %v329
      %v333 = vshrl.u32 2475754826, %v330
      %v334 = vor.u32 %v332, %v333
      %v335 = vshll.u32 2475754826, %v329
      %v336 = vshrl.u32 2131351028, %v330
      %v337 = vor.u32 %v335, %v336
      %v338 = vshll.u32 2131351028, %v329
      %v339 = vshrl.u32 2102212464, %v330
      %v340 = vor.u32 %v338, %v339
      %v341 = vshll.u32 2102212464, %v329
      %v342 = vshrl.u32 920167782, %v330
      %v343 = vor.u32 %v341, %v342
      %v344 = vshll.u32 920167782, %v329
      %v345 = vshrl.u32 1326507024, %v330
      %v346 = vor.u32 %v344, %v345
      %vm347 = vcmp.lt.s32.totalorder %v328, 1
      %vm348 = vcmp.lt.s32.totalorder %v328, 2
      %vm349 = vcmp.lt.s32.totalorder %v328, 3
      %vm350 = vcmp.lt.s32.totalorder %v328, 4
      %v351 = vsel %vm347, %v331, %v334
      %v352 = vsel %vm350, %v340, 2102212464
      %v353 = vsel %vm349, %v337, %v352
      %v354 = vsel %vm348, %v351, %v353
      %v355 = vsel %vm347, %v334, %v337
      %v356 = vsel %vm350, %v343, 920167782
      %v357 = vsel %vm349, %v340, %v356
      %v358 = vsel %vm348, %v355, %v357
      %v359 = vsel %vm347, %v337, %v340
      %v360 = vsel %vm350, %v346, 1326507024
      %v361 = vsel %vm349, %v343, %v360
      %v362 = vsel %vm348, %v359, %v361
      %v363 = vshll.u32 %v323, 8
      %v364 = vand.u32 %v363, 65535
      %v365 = vshrl.u32 %v363, 16
      %v366 = vand.u32 %v362, 65535
      %v367 = vshrl.u32 %v362, 16
      %v368 = vmul.u32 %v364, %v366
      %v369 = vmul.u32 %v364, %v367
      %v370 = vmul.u32 %v365, %v366
      %v371 = vmul.u32 %v365, %v367
      %v372 = vshll.u32 %v369, 16
      %v373 = vshrl.u32 %v369, 16
      %v374 = vshll.u32 %v370, 16
      %v375 = vshrl.u32 %v370, 16
      %vm376 = vc.u32 %v368, %v372
      %v377 = vsel %vm376, 1, 0
      %v378 = vadd.s32 %v368, %v372
      %v379 = vadd.s32 %v371, %v377
      %vm380 = vc.u32 %v378, %v374
      %v381 = vsel %vm380, 1, 0
      %v382 = vadd.s32 %v378, %v374
      %v383 = vadd.s32 %v379, %v381
      %v384 = vadd.s32 %v383, %v373
      %v385 = vadd.s32 %v384, %v375
      %v386 = vand.u32 %v363, 65535
      %v387 = vshrl.u32 %v363, 16
      %v388 = vand.u32 %v358, 65535
      %v389 = vshrl.u32 %v358, 16
      %v390 = vmul.u32 %v386, %v388
      %v391 = vmul.u32 %v386, %v389
      %v392 = vmul.u32 %v387, %v388
      %v393 = vmul.u32 %v387, %v389
      %v394 = vshll.u32 %v391, 16
      %v395 = vshrl.u32 %v391, 16
      %v396 = vshll.u32 %v392, 16
      %v397 = vshrl.u32 %v392, 16
      %vm398 = vc.u32 %v390, %v394
      %v399 = vsel %vm398, 1, 0
      %v400 = vadd.s32 %v390, %v394
      %v401 = vadd.s32 %v393, %v399
      %vm402 = vc.u32 %v400, %v396
      %v403 = vsel %vm402, 1, 0
      %v404 = vadd.s32 %v400, %v396
      %v405 = vadd.s32 %v401, %v403
      %v406 = vadd.s32 %v405, %v395
      %v407 = vadd.s32 %v406, %v397
      %v408 = vmul.u32 %v363, %v354
      %v409 = vadd.s32 %v385, %v404
      %vm410 = vc.u32 %v385, %v404
      %v411 = vadd.s32 %v407, 1
      %v412 = vsel %vm410, %v411, %v407
      %v413 = vadd.s32 %v408, %v412
      %v414 = vadd.s32 %v413, 536870912
      %v415 = vshrl.u32 %v414, 30
      %v416 = vshll.u32 %v415, 30
      %v417 = vsub.s32 %v413, %v416
      %vm418 = vcmp.lt.s32.totalorder %v417, 0
      %v419 = vsub.s32 0, %v417
      %v420 = vsel %vm418, %v419, %v417
      %v421 = vclz %v420
      %v422 = vsub.s32 %v421, 2
      %vm423 = vcmp.gt.s32.totalorder 0, %v422
      %v424 = vsel %vm423, 0, %v422
      %v425 = vsub.s32 32, %v424
      %v426 = vshll.u32 %v417, %v424
      %v427 = vshrl.u32 %v409, %v425
      %v428 = vor.u32 %v426, %v427
      %v429 = vsub.s32 4294967266, %v424
      %v430 = vadd.s32 %v429, 127
      %v431 = vshll.u32 %v430, 23
      %v432 = vor.u32 4788187, %v431
      %v433 = vand.u32 2147483647, %v432
      %v435 = vcvt.s32.f32 %v428
      %v436 = vmul.f32 %v435, %v433
      %v437 = vxor.u32 %v436, 2147483648
      %v438 = vsel %vm317, %v437, %v436
      %v439 = vsub.s32 4, %v415
      %v440 = vsel %vm317, %v439, %v415
      %v441 = vsel %vm316, %v307, %v438
      %v442 = vsel %vm316, 0, %v440
      %v443 = vmul.f32 %v441, %v441
      %v444 = vmul.f32 %v443, -0.001358992
      %v445 = vadd.f32 %v444, 0.041655596
      %v446 = vmul.f32 %v443, %v445
      %v447 = vadd.f32 %v446, -0.4999988
      %v448 = vmul.f32 %v443, %v447
      %v449 = vadd.f32 1.0, %v448
      %v450 = vmul.f32 %v441, %v441
      %v451 = vmul.f32 %v450, -0.00019511016
      %v452 = vadd.f32 %v451, 0.008332121
      %v453 = vmul.f32 %v450, %v452
      %v454 = vadd.f32 %v453, -0.16666654
      %v455 = vmul.f32 %v450, %v454
      %v456 = vadd.f32 %v455, 1.0
      %v457 = vmul.f32 %v456, %v441
      %vm458 = vweird.f32 %v307
      %v459 = vand.u32 %v442, 3
      %vm460 = vcmp.lt.s32.totalorder %v459, 2
      %vm461 = vcmp.eq.s32.totalorder %v459, 0
      %v462 = vxor.u32 %v457, 2147483648
      %v463 = vsel %vm461, %v449, %v462
      %vm464 = vcmp.eq.s32.totalorder %v459, 2
      %v465 = vxor.u32 %v449, 2147483648
      %v466 = vsel %vm464, %v465, %v457
      %v467 = vsel %vm460, %v463, %v466
      %v468 = vsel %vm458, nan, %v467
      %v469 = vand.u32 2147483647, %v308
      %vm470 = vcmp.le.f32.partialorder %v469, 0.7853982
      %vm471 = vcmp.lt.s32.totalorder %v308, 0
      %v472 = vand.u32 %v308, 2139095040
      %v473 = vshrl.u32 %v472, 23
      %v474 = vsub.s32 %v473, 127
      %v475 = vand.u32 2147483647, %v308
      %v476 = vand.u32 %v475, 8388607
      %v477 = vor.u32 %v476, 8388608
      %v478 = vsub.s32 0, %v477
      %v479 = vadd.s32 %v474, 1
      %vm480 = vcmp.gt.s32.totalorder %v479, 0
      %v481 = vsel %vm480, %v479, 0
      %v482 = vshrl.u32 %v481, 5
      %v483 = vand.u32 %v481, 31
      %v484 = vsub.s32 32, %v483
      %v485 = vshrl.u32 683565275, %v484
      %v486 = vshll.u32 683565275, %v483
      %v487 = vshrl.u32 2475754826, %v484
      %v488 = vor.u32 %v486, %v487
      %v489 = vshll.u32 2475754826, %v483
      %v490 = vshrl.u32 2131351028, %v484
      %v491 = vor.u32 %v489, %v490
      %v492 = vshll.u32 2131351028, %v483
      %v493 = vshrl.u32 2102212464, %v484
      %v494 = vor.u32 %v492, %v493
      %v495 = vshll.u32 2102212464, %v483
      %v496 = vshrl.u32 920167782, %v484
      %v497 = vor.u32 %v495, %v496
      %v498 = vshll.u32 920167782, %v483
      %v499 = vshrl.u32 1326507024, %v484
      %v500 = vor.u32 %v498, %v499
      %vm501 = vcmp.lt.s32.totalorder %v482, 1
      %vm502 = vcmp.lt.s32.totalorder %v482, 2
      %vm503 = vcmp.lt.s32.totalorder %v482, 3
      %vm504 = vcmp.lt.s32.totalorder %v482, 4
      %v505 = vsel %vm501, %v485, %v488
      %v506 = vsel %vm504, %v494, 2102212464
      %v507 = vsel %vm503, %v491, %v506
      %v508 = vsel %vm502, %v505, %v507
      %v509 = vsel %vm501, %v488, %v491
      %v510 = vsel %vm504, %v497, 920167782
      %v511 = vsel %vm503, %v494, %v510
      %v512 = vsel %vm502, %v509, %v511
      %v513 = vsel %vm501, %v491, %v494
      %v514 = vsel %vm504, %v500, 1326507024
      %v515 = vsel %vm503, %v497, %v514
      %v516 = vsel %vm502, %v513, %v515
      %v517 = vshll.u32 %v477, 8
      %v518 = vand.u32 %v517, 65535
      %v519 = vshrl.u32 %v517, 16
      %v520 = vand.u32 %v516, 65535
      %v521 = vshrl.u32 %v516, 16
      %v522 = vmul.u32 %v518, %v520
      %v523 = vmul.u32 %v518, %v521
      %v524 = vmul.u32 %v519, %v520
      %v525 = vmul.u32 %v519, %v521
      %v526 = vshll.u32 %v523, 16
      %v527 = vshrl.u32 %v523, 16
      %v528 = vshll.u32 %v524, 16
      %v529 = vshrl.u32 %v524, 16
      %vm530 = vc.u32 %v522, %v526
      %v531 = vsel %vm530, 1, 0
      %v532 = vadd.s32 %v522, %v526
      %v533 = vadd.s32 %v525, %v531
      %vm534 = vc.u32 %v532, %v528
      %v535 = vsel %vm534, 1, 0
      %v536 = vadd.s32 %v532, %v528
      %v537 = vadd.s32 %v533, %v535
      %v538 = vadd.s32 %v537, %v527
      %v539 = vadd.s32 %v538, %v529
      %v540 = vand.u32 %v517, 65535
      %v541 = vshrl.u32 %v517, 16
      %v542 = vand.u32 %v512, 65535
      %v543 = vshrl.u32 %v512, 16
      %v544 = vmul.u32 %v540, %v542
      %v545 = vmul.u32 %v540, %v543
      %v546 = vmul.u32 %v541, %v542
      %v547 = vmul.u32 %v541, %v543
      %v548 = vshll.u32 %v545, 16
      %v549 = vshrl.u32 %v545, 16
      %v550 = vshll.u32 %v546, 16
      %v551 = vshrl.u32 %v546, 16
      %vm552 = vc.u32 %v544, %v548
      %v553 = vsel %vm552, 1, 0
      %v554 = vadd.s32 %v544, %v548
      %v555 = vadd.s32 %v547, %v553
      %vm556 = vc.u32 %v554, %v550
      %v557 = vsel %vm556, 1, 0
      %v558 = vadd.s32 %v554, %v550
      %v559 = vadd.s32 %v555, %v557
      %v560 = vadd.s32 %v559, %v549
      %v561 = vadd.s32 %v560, %v551
      %v562 = vmul.u32 %v517, %v508
      %v563 = vadd.s32 %v539, %v558
      %vm564 = vc.u32 %v539, %v558
      %v565 = vadd.s32 %v561, 1
      %v566 = vsel %vm564, %v565, %v561
      %v567 = vadd.s32 %v562, %v566
      %v568 = vadd.s32 %v567, 536870912
      %v569 = vshrl.u32 %v568, 30
      %v570 = vshll.u32 %v569, 30
      %v571 = vsub.s32 %v567, %v570
      %vm572 = vcmp.lt.s32.totalorder %v571, 0
      %v573 = vsub.s32 0, %v571
      %v574 = vsel %vm572, %v573, %v571
      %v575 = vclz %v574
      %v576 = vsub.s32 %v575, 2
      %vm577 = vcmp.gt.s32.totalorder 0, %v576
      %v578 = vsel %vm577, 0, %v576
      %v579 = vsub.s32 32, %v578
      %v580 = vshll.u32 %v571, %v578
      %v581 = vshrl.u32 %v563, %v579
      %v582 = vor.u32 %v580, %v581
      %v583 = vsub.s32 4294967266, %v578
      %v584 = vadd.s32 %v583, 127
      %v585 = vshll.u32 %v584, 23
      %v586 = vor.u32 4788187, %v585
      %v587 = vand.u32 2147483647, %v586
      %v589 = vcvt.s32.f32 %v582
      %v590 = vmul.f32 %v589, %v587
      %v591 = vxor.u32 %v590, 2147483648
      %v592 = vsel %vm471, %v591, %v590
      %v593 = vsub.s32 4, %v569
      %v594 = vsel %vm471, %v593, %v569
      %v595 = vsel %vm470, %v308, %v592
      %v596 = vsel %vm470, 0, %v594
      %v597 = vmul.f32 %v595, %v595
      %v598 = vmul.f32 %v597, -0.001358992
      %v599 = vadd.f32 %v598, 0.041655596
      %v600 = vmul.f32 %v597, %v599
      %v601 = vadd.f32 %v600, -0.4999988
      %v602 = vmul.f32 %v597, %v601
      %v603 = vadd.f32 1.0, %v602
      %v604 = vmul.f32 %v595, %v595
      %v605 = vmul.f32 %v604, -0.00019511016
      %v606 = vadd.f32 %v605, 0.008332121
      %v607 = vmul.f32 %v604, %v606
      %v608 = vadd.f32 %v607, -0.16666654
      %v609 = vmul.f32 %v604, %v608
      %v610 = vadd.f32 %v609, 1.0
      %v611 = vmul.f32 %v610, %v595
      %vm612 = vweird.f32 %v308
      %v613 = vand.u32 %v596, 3
      %vm614 = vcmp.lt.s32.totalorder %v613, 2
      %vm615 = vcmp.eq.s32.totalorder %v613, 0
      %v616 = vxor.u32 %v611, 2147483648
      %v617 = vsel %vm615, %v603, %v616
      %vm618 = vcmp.eq.s32.totalorder %v613, 2
      %v619 = vxor.u32 %v603, 2147483648
      %v620 = vsel %vm618, %v619, %v611
      %v621 = vsel %vm614, %v617, %v620
      %v622 = vsel %vm612, nan, %v621
      %v623 = vand.u32 2147483647, %v309
      %vm624 = vcmp.le.f32.partialorder %v623, 0.7853982
      %vm625 = vcmp.lt.s32.totalorder %v309, 0
      %v626 = vand.u32 %v309, 2139095040
      %v627 = vshrl.u32 %v626, 23
      %v628 = vsub.s32 %v627, 127
      %v629 = vand.u32 2147483647, %v309
      %v630 = vand.u32 %v629, 8388607
      %v631 = vor.u32 %v630, 8388608
      %v632 = vsub.s32 0, %v631
      %v633 = vadd.s32 %v628, 1
      %vm634 = vcmp.gt.s32.totalorder %v633, 0
      %v635 = vsel %vm634, %v633, 0
      %v636 = vshrl.u32 %v635, 5
      %v637 = vand.u32 %v635, 31
      %v638 = vsub.s32 32, %v637
      %v639 = vshrl.u32 683565275, %v638
      %v640 = vshll.u32 683565275, %v637
      %v641 = vshrl.u32 2475754826, %v638
      %v642 = vor.u32 %v640, %v641
      %v643 = vshll.u32 2475754826, %v637
      %v644 = vshrl.u32 2131351028, %v638
      %v645 = vor.u32 %v643, %v644
      %v646 = vshll.u32 2131351028, %v637
      %v647 = vshrl.u32 2102212464, %v638
      %v648 = vor.u32 %v646, %v647
      %v649 = vshll.u32 2102212464, %v637
      %v650 = vshrl.u32 920167782, %v638
      %v651 = vor.u32 %v649, %v650
      %v652 = vshll.u32 920167782, %v637
      %v653 = vshrl.u32 1326507024, %v638
      %v654 = vor.u32 %v652, %v653
      %vm655 = vcmp.lt.s32.totalorder %v636, 1
      %vm656 = vcmp.lt.s32.totalorder %v636, 2
      %vm657 = vcmp.lt.s32.totalorder %v636, 3
      %vm658 = vcmp.lt.s32.totalorder %v636, 4
      %v659 = vsel %vm655, %v639, %v642
      %v660 = vsel %vm658, %v648, 2102212464
      %v661 = vsel %vm657, %v645, %v660
      %v662 = vsel %vm656, %v659, %v661
      %v663 = vsel %vm655, %v642, %v645
      %v664 = vsel %vm658, %v651, 920167782
      %v665 = vsel %vm657, %v648, %v664
      %v666 = vsel %vm656, %v663, %v665
      %v667 = vsel %vm655, %v645, %v648
      %v668 = vsel %vm658, %v654, 1326507024
      %v669 = vsel %vm657, %v651, %v668
      %v670 = vsel %vm656, %v667, %v669
      %v671 = vshll.u32 %v631, 8
      %v672 = vand.u32 %v671, 65535
      %v673 = vshrl.u32 %v671, 16
      %v674 = vand.u32 %v670, 65535
      %v675 = vshrl.u32 %v670, 16
      %v676 = vmul.u32 %v672, %v674
      %v677 = vmul.u32 %v672, %v675
      %v678 = vmul.u32 %v673, %v674
      %v679 = vmul.u32 %v673, %v675
      %v680 = vshll.u32 %v677, 16
      %v681 = vshrl.u32 %v677, 16
      %v682 = vshll.u32 %v678, 16
      %v683 = vshrl.u32 %v678, 16
      %vm684 = vc.u32 %v676, %v680
      %v685 = vsel %vm684, 1, 0
      %v686 = vadd.s32 %v676, %v680
      %v687 = vadd.s32 %v679, %v685
      %vm688 = vc.u32 %v686, %v682
      %v689 = vsel %vm688, 1, 0
      %v690 = vadd.s32 %v686, %v682
      %v691 = vadd.s32 %v687, %v689
      %v692 = vadd.s32 %v691, %v681
      %v693 = vadd.s32 %v692, %v683
      %v694 = vand.u32 %v671, 65535
      %v695 = vshrl.u32 %v671, 16
      %v696 = vand.u32 %v666, 65535
      %v697 = vshrl.u32 %v666, 16
      %v698 = vmul.u32 %v694, %v696
      %v699 = vmul.u32 %v694, %v697
      %v700 = vmul.u32 %v695, %v696
      %v701 = vmul.u32 %v695, %v697
      %v702 = vshll.u32 %v699, 16
      %v703 = vshrl.u32 %v699, 16
      %v704 = vshll.u32 %v700, 16
      %v705 = vshrl.u32 %v700, 16
      %vm706 = vc.u32 %v698, %v702
      %v707 = vsel %vm706, 1, 0
      %v708 = vadd.s32 %v698, %v702
      %v709 = vadd.s32 %v701, %v707
      %vm710 = vc.u32 %v708, %v704
      %v711 = vsel %vm710, 1, 0
      %v712 = vadd.s32 %v708, %v704
      %v713 = vadd.s32 %v709, %v711
      %v714 = vadd.s32 %v713, %v703
      %v715 = vadd.s32 %v714, %v705
      %v716 = vmul.u32 %v671, %v662
      %v717 = vadd.s32 %v693, %v712
      %vm718 = vc.u32 %v693, %v712
      %v719 = vadd.s32 %v715, 1
      %v720 = vsel %vm718, %v719, %v715
      %v721 = vadd.s32 %v716, %v720
      %v722 = vadd.s32 %v721, 536870912
      %v723 = vshrl.u32 %v722, 30
      %v724 = vshll.u32 %v723, 30
      %v725 = vsub.s32 %v721, %v724
      %vm726 = vcmp.lt.s32.totalorder %v725, 0
      %v727 = vsub.s32 0, %v725
      %v728 = vsel %vm726, %v727, %v725
      %v729 = vclz %v728
      %v730 = vsub.s32 %v729, 2
      %vm731 = vcmp.gt.s32.totalorder 0, %v730
      %v732 = vsel %vm731, 0, %v730
      %v733 = vsub.s32 32, %v732
      %v734 = vshll.u32 %v725, %v732
      %v735 = vshrl.u32 %v717, %v733
      %v736 = vor.u32 %v734, %v735
      %v737 = vsub.s32 4294967266, %v732
      %v738 = vadd.s32 %v737, 127
      %v739 = vshll.u32 %v738, 23
      %v740 = vor.u32 4788187, %v739
      %v741 = vand.u32 2147483647, %v740
      %v743 = vcvt.s32.f32 %v736
      %v744 = vmul.f32 %v743, %v741
      %v745 = vxor.u32 %v744, 2147483648
      %v746 = vsel %vm625, %v745, %v744
      %v747 = vsub.s32 4, %v723
      %v748 = vsel %vm625, %v747, %v723
      %v749 = vsel %vm624, %v309, %v746
      %v750 = vsel %vm624, 0, %v748
      %v751 = vmul.f32 %v749, %v749
      %v752 = vmul.f32 %v751, -0.001358992
      %v753 = vadd.f32 %v752, 0.041655596
      %v754 = vmul.f32 %v751, %v753
      %v755 = vadd.f32 %v754, -0.4999988
      %v756 = vmul.f32 %v751, %v755
      %v757 = vadd.f32 1.0, %v756
      %v758 = vmul.f32 %v749, %v749
      %v759 = vmul.f32 %v758, -0.00019511016
      %v760 = vadd.f32 %v759, 0.008332121
      %v761 = vmul.f32 %v758, %v760
      %v762 = vadd.f32 %v761, -0.16666654
      %v763 = vmul.f32 %v758, %v762
      %v764 = vadd.f32 %v763, 1.0
      %v765 = vmul.f32 %v764, %v749
      %vm766 = vweird.f32 %v309
      %v767 = vand.u32 %v750, 3
      %vm768 = vcmp.lt.s32.totalorder %v767, 2
      %vm769 = vcmp.eq.s32.totalorder %v767, 0
      %v770 = vxor.u32 %v765, 2147483648
      %v771 = vsel %vm769, %v757, %v770
      %vm772 = vcmp.eq.s32.totalorder %v767, 2
      %v773 = vxor.u32 %v757, 2147483648
      %v774 = vsel %vm772, %v773, %v765
      %v775 = vsel %vm768, %v771, %v774
      %v776 = vsel %vm766, nan, %v775
      %v777 = vand.u32 2147483647, %v310
      %vm778 = vcmp.le.f32.partialorder %v777, 0.7853982
      %vm779 = vcmp.lt.s32.totalorder %v310, 0
      %v780 = vand.u32 %v310, 2139095040
      %v781 = vshrl.u32 %v780, 23
      %v782 = vsub.s32 %v781, 127
      %v783 = vand.u32 2147483647, %v310
      %v784 = vand.u32 %v783, 8388607
      %v785 = vor.u32 %v784, 8388608
      %v786 = vsub.s32 0, %v785
      %v787 = vadd.s32 %v782, 1
      %vm788 = vcmp.gt.s32.totalorder %v787, 0
      %v789 = vsel %vm788, %v787, 0
      %v790 = vshrl.u32 %v789, 5
      %v791 = vand.u32 %v789, 31
      %v792 = vsub.s32 32, %v791
      %v793 = vshrl.u32 683565275, %v792
      %v794 = vshll.u32 683565275, %v791
      %v795 = vshrl.u32 2475754826, %v792
      %v796 = vor.u32 %v794, %v795
      %v797 = vshll.u32 2475754826, %v791
      %v798 = vshrl.u32 2131351028, %v792
      %v799 = vor.u32 %v797, %v798
      %v800 = vshll.u32 2131351028, %v791
      %v801 = vshrl.u32 2102212464, %v792
      %v802 = vor.u32 %v800, %v801
      %v803 = vshll.u32 2102212464, %v791
      %v804 = vshrl.u32 920167782, %v792
      %v805 = vor.u32 %v803, %v804
      %v806 = vshll.u32 920167782, %v791
      %v807 = vshrl.u32 1326507024, %v792
      %v808 = vor.u32 %v806, %v807
      %vm809 = vcmp.lt.s32.totalorder %v790, 1
      %vm810 = vcmp.lt.s32.totalorder %v790, 2
      %vm811 = vcmp.lt.s32.totalorder %v790, 3
      %vm812 = vcmp.lt.s32.totalorder %v790, 4
      %v813 = vsel %vm809, %v793, %v796
      %v814 = vsel %vm812, %v802, 2102212464
      %v815 = vsel %vm811, %v799, %v814
      %v816 = vsel %vm810, %v813, %v815
      %v817 = vsel %vm809, %v796, %v799
      %v818 = vsel %vm812, %v805, 920167782
      %v819 = vsel %vm811, %v802, %v818
      %v820 = vsel %vm810, %v817, %v819
      %v821 = vsel %vm809, %v799, %v802
      %v822 = vsel %vm812, %v808, 1326507024
      %v823 = vsel %vm811, %v805, %v822
      %v824 = vsel %vm810, %v821, %v823
      %v825 = vshll.u32 %v785, 8
      %v826 = vand.u32 %v825, 65535
      %v827 = vshrl.u32 %v825, 16
      %v828 = vand.u32 %v824, 65535
      %v829 = vshrl.u32 %v824, 16
      %v830 = vmul.u32 %v826, %v828
      %v831 = vmul.u32 %v826, %v829
      %v832 = vmul.u32 %v827, %v828
      %v833 = vmul.u32 %v827, %v829
      %v834 = vshll.u32 %v831, 16
      %v835 = vshrl.u32 %v831, 16
      %v836 = vshll.u32 %v832, 16
      %v837 = vshrl.u32 %v832, 16
      %vm838 = vc.u32 %v830, %v834
      %v839 = vsel %vm838, 1, 0
      %v840 = vadd.s32 %v830, %v834
      %v841 = vadd.s32 %v833, %v839
      %vm842 = vc.u32 %v840, %v836
      %v843 = vsel %vm842, 1, 0
      %v844 = vadd.s32 %v840, %v836
      %v845 = vadd.s32 %v841, %v843
      %v846 = vadd.s32 %v845, %v835
      %v847 = vadd.s32 %v846, %v837
      %v848 = vand.u32 %v825, 65535
      %v849 = vshrl.u32 %v825, 16
      %v850 = vand.u32 %v820, 65535
      %v851 = vshrl.u32 %v820, 16
      %v852 = vmul.u32 %v848, %v850
      %v853 = vmul.u32 %v848, %v851
      %v854 = vmul.u32 %v849, %v850
      %v855 = vmul.u32 %v849, %v851
      %v856 = vshll.u32 %v853, 16
      %v857 = vshrl.u32 %v853, 16
      %v858 = vshll.u32 %v854, 16
      %v859 = vshrl.u32 %v854, 16
      %vm860 = vc.u32 %v852, %v856
      %v861 = vsel %vm860, 1, 0
      %v862 = vadd.s32 %v852, %v856
      %v863 = vadd.s32 %v855, %v861
      %vm864 = vc.u32 %v862, %v858
      %v865 = vsel %vm864, 1, 0
      %v866 = vadd.s32 %v862, %v858
      %v867 = vadd.s32 %v863, %v865
      %v868 = vadd.s32 %v867, %v857
      %v869 = vadd.s32 %v868, %v859
      %v870 = vmul.u32 %v825, %v816
      %v871 = vadd.s32 %v847, %v866
      %vm872 = vc.u32 %v847, %v866
      %v873 = vadd.s32 %v869, 1
      %v874 = vsel %vm872, %v873, %v869
      %v875 = vadd.s32 %v870, %v874
      %v876 = vadd.s32 %v875, 536870912
      %v877 = vshrl.u32 %v876, 30
      %v878 = vshll.u32 %v877, 30
      %v879 = vsub.s32 %v875, %v878
      %vm880 = vcmp.lt.s32.totalorder %v879, 0
      %v881 = vsub.s32 0, %v879
      %v882 = vsel %vm880, %v881, %v879
      %v883 = vclz %v882
      %v884 = vsub.s32 %v883, 2
      %vm885 = vcmp.gt.s32.totalorder 0, %v884
      %v886 = vsel %vm885, 0, %v884
      %v887 = vsub.s32 32, %v886
      %v888 = vshll.u32 %v879, %v886
      %v889 = vshrl.u32 %v871, %v887
      %v890 = vor.u32 %v888, %v889
      %v891 = vsub.s32 4294967266, %v886
      %v892 = vadd.s32 %v891, 127
      %v893 = vshll.u32 %v892, 23
      %v894 = vor.u32 4788187, %v893
      %v895 = vand.u32 2147483647, %v894
      %v897 = vcvt.s32.f32 %v890
      %v898 = vmul.f32 %v897, %v895
      %v899 = vxor.u32 %v898, 2147483648
      %v900 = vsel %vm779, %v899, %v898
      %v901 = vsub.s32 4, %v877
      %v902 = vsel %vm779, %v901, %v877
      %v903 = vsel %vm778, %v310, %v900
      %v904 = vsel %vm778, 0, %v902
      %v905 = vmul.f32 %v903, %v903
      %v906 = vmul.f32 %v905, -0.001358992
      %v907 = vadd.f32 %v906, 0.041655596
      %v908 = vmul.f32 %v905, %v907
      %v909 = vadd.f32 %v908, -0.4999988
      %v910 = vmul.f32 %v905, %v909
      %v911 = vadd.f32 1.0, %v910
      %v912 = vmul.f32 %v903, %v903
      %v913 = vmul.f32 %v912, -0.00019511016
      %v914 = vadd.f32 %v913, 0.008332121
      %v915 = vmul.f32 %v912, %v914
      %v916 = vadd.f32 %v915, -0.16666654
      %v917 = vmul.f32 %v912, %v916
      %v918 = vadd.f32 %v917, 1.0
      %v919 = vmul.f32 %v918, %v903
      %vm920 = vweird.f32 %v310
      %v921 = vand.u32 %v904, 3
      %vm922 = vcmp.lt.s32.totalorder %v921, 2
      %vm923 = vcmp.eq.s32.totalorder %v921, 0
      %v924 = vxor.u32 %v919, 2147483648
      %v925 = vsel %vm923, %v911, %v924
      %vm926 = vcmp.eq.s32.totalorder %v921, 2
      %v927 = vxor.u32 %v911, 2147483648
      %v928 = vsel %vm926, %v927, %v919
      %v929 = vsel %vm922, %v925, %v928
      %v930 = vsel %vm920, nan, %v929
      %v931 = vand.u32 2147483647, %v311
      %vm932 = vcmp.le.f32.partialorder %v931, 0.7853982
      %vm933 = vcmp.lt.s32.totalorder %v311, 0
      %v934 = vand.u32 %v311, 2139095040
      %v935 = vshrl.u32 %v934, 23
      %v936 = vsub.s32 %v935, 127
      %v937 = vand.u32 2147483647, %v311
      %v938 = vand.u32 %v937, 8388607
      %v939 = vor.u32 %v938, 8388608
      %v940 = vsub.s32 0, %v939
      %v941 = vadd.s32 %v936, 1
      %vm942 = vcmp.gt.s32.totalorder %v941, 0
      %v943 = vsel %vm942, %v941, 0
      %v944 = vshrl.u32 %v943, 5
      %v945 = vand.u32 %v943, 31
      %v946 = vsub.s32 32, %v945
      %v947 = vshrl.u32 683565275, %v946
      %v948 = vshll.u32 683565275, %v945
      %v949 = vshrl.u32 2475754826, %v946
      %v950 = vor.u32 %v948, %v949
      %v951 = vshll.u32 2475754826, %v945
      %v952 = vshrl.u32 2131351028, %v946
      %v953 = vor.u32 %v951, %v952
      %v954 = vshll.u32 2131351028, %v945
      %v955 = vshrl.u32 2102212464, %v946
      %v956 = vor.u32 %v954, %v955
      %v957 = vshll.u32 2102212464, %v945
      %v958 = vshrl.u32 920167782, %v946
      %v959 = vor.u32 %v957, %v958
      %v960 = vshll.u32 920167782, %v945
      %v961 = vshrl.u32 1326507024, %v946
      %v962 = vor.u32 %v960, %v961
      %vm963 = vcmp.lt.s32.totalorder %v944, 1
      %vm964 = vcmp.lt.s32.totalorder %v944, 2
      %vm965 = vcmp.lt.s32.totalorder %v944, 3
      %vm966 = vcmp.lt.s32.totalorder %v944, 4
      %v967 = vsel %vm963, %v947, %v950
      %v968 = vsel %vm966, %v956, 2102212464
      %v969 = vsel %vm965, %v953, %v968
      %v970 = vsel %vm964, %v967, %v969
      %v971 = vsel %vm963, %v950, %v953
      %v972 = vsel %vm966, %v959, 920167782
      %v973 = vsel %vm965, %v956, %v972
      %v974 = vsel %vm964, %v971, %v973
      %v975 = vsel %vm963, %v953, %v956
      %v976 = vsel %vm966, %v962, 1326507024
      %v977 = vsel %vm965, %v959, %v976
      %v978 = vsel %vm964, %v975, %v977
      %v979 = vshll.u32 %v939, 8
      %v980 = vand.u32 %v979, 65535
      %v981 = vshrl.u32 %v979, 16
      %v982 = vand.u32 %v978, 65535
      %v983 = vshrl.u32 %v978, 16
      %v984 = vmul.u32 %v980, %v982
      %v985 = vmul.u32 %v980, %v983
      %v986 = vmul.u32 %v981, %v982
      %v987 = vmul.u32 %v981, %v983
      %v988 = vshll.u32 %v985, 16
      %v989 = vshrl.u32 %v985, 16
      %v990 = vshll.u32 %v986, 16
      %v991 = vshrl.u32 %v986, 16
      %vm992 = vc.u32 %v984, %v988
      %v993 = vsel %vm992, 1, 0
      %v994 = vadd.s32 %v984, %v988
      %v995 = vadd.s32 %v987, %v993
      %vm996 = vc.u32 %v994, %v990
      %v997 = vsel %vm996, 1, 0
      %v998 = vadd.s32 %v994, %v990
      %v999 = vadd.s32 %v995, %v997
      %v1000 = vadd.s32 %v999, %v989
      %v1001 = vadd.s32 %v1000, %v991
      %v1002 = vand.u32 %v979, 65535
      %v1003 = vshrl.u32 %v979, 16
      %v1004 = vand.u32 %v974, 65535
      %v1005 = vshrl.u32 %v974, 16
      %v1006 = vmul.u32 %v1002, %v1004
      %v1007 = vmul.u32 %v1002, %v1005
      %v1008 = vmul.u32 %v1003, %v1004
      %v1009 = vmul.u32 %v1003, %v1005
      %v1010 = vshll.u32 %v1007, 16
      %v1011 = vshrl.u32 %v1007, 16
      %v1012 = vshll.u32 %v1008, 16
      %v1013 = vshrl.u32 %v1008, 16
      %vm1014 = vc.u32 %v1006, %v1010
      %v1015 = vsel %vm1014, 1, 0
      %v1016 = vadd.s32 %v1006, %v1010
      %v1017 = vadd.s32 %v1009, %v1015
      %vm1018 = vc.u32 %v1016, %v1012
      %v1019 = vsel %vm1018, 1, 0
      %v1020 = vadd.s32 %v1016, %v1012
      %v1021 = vadd.s32 %v1017, %v1019
      %v1022 = vadd.s32 %v1021, %v1011
      %v1023 = vadd.s32 %v1022, %v1013
      %v1024 = vmul.u32 %v979, %v970
      %v1025 = vadd.s32 %v1001, %v1020
      %vm1026 = vc.u32 %v1001, %v1020
      %v1027 = vadd.s32 %v1023, 1
      %v1028 = vsel %vm1026, %v1027, %v1023
      %v1029 = vadd.s32 %v1024, %v1028
      %v1030 = vadd.s32 %v1029, 536870912
      %v1031 = vshrl.u32 %v1030, 30
      %v1032 = vshll.u32 %v1031, 30
      %v1033 = vsub.s32 %v1029, %v1032
      %vm1034 = vcmp.lt.s32.totalorder %v1033, 0
      %v1035 = vsub.s32 0, %v1033
      %v1036 = vsel %vm1034, %v1035, %v1033
      %v1037 = vclz %v1036
      %v1038 = vsub.s32 %v1037, 2
      %vm1039 = vcmp.gt.s32.totalorder 0, %v1038
      %v1040 = vsel %vm1039, 0, %v1038
      %v1041 = vsub.s32 32, %v1040
      %v1042 = vshll.u32 %v1033, %v1040
      %v1043 = vshrl.u32 %v1025, %v1041
      %v1044 = vor.u32 %v1042, %v1043
      %v1045 = vsub.s32 4294967266, %v1040
      %v1046 = vadd.s32 %v1045, 127
      %v1047 = vshll.u32 %v1046, 23
      %v1048 = vor.u32 4788187, %v1047
      %v1049 = vand.u32 2147483647, %v1048
      %v1051 = vcvt.s32.f32 %v1044
      %v1052 = vmul.f32 %v1051, %v1049
      %v1053 = vxor.u32 %v1052, 2147483648
      %v1054 = vsel %vm933, %v1053, %v1052
      %v1055 = vsub.s32 4, %v1031
      %v1056 = vsel %vm933, %v1055, %v1031
      %v1057 = vsel %vm932, %v311, %v1054
      %v1058 = vsel %vm932, 0, %v1056
      %v1059 = vmul.f32 %v1057, %v1057
      %v1060 = vmul.f32 %v1059, -0.001358992
      %v1061 = vadd.f32 %v1060, 0.041655596
      %v1062 = vmul.f32 %v1059, %v1061
      %v1063 = vadd.f32 %v1062, -0.4999988
      %v1064 = vmul.f32 %v1059, %v1063
      %v1065 = vadd.f32 1.0, %v1064
      %v1066 = vmul.f32 %v1057, %v1057
      %v1067 = vmul.f32 %v1066, -0.00019511016
      %v1068 = vadd.f32 %v1067, 0.008332121
      %v1069 = vmul.f32 %v1066, %v1068
      %v1070 = vadd.f32 %v1069, -0.16666654
      %v1071 = vmul.f32 %v1066, %v1070
      %v1072 = vadd.f32 %v1071, 1.0
      %v1073 = vmul.f32 %v1072, %v1057
      %vm1074 = vweird.f32 %v311
      %v1075 = vand.u32 %v1058, 3
      %vm1076 = vcmp.lt.s32.totalorder %v1075, 2
      %vm1077 = vcmp.eq.s32.totalorder %v1075, 0
      %v1078 = vxor.u32 %v1073, 2147483648
      %v1079 = vsel %vm1077, %v1065, %v1078
      %vm1080 = vcmp.eq.s32.totalorder %v1075, 2
      %v1081 = vxor.u32 %v1065, 2147483648
      %v1082 = vsel %vm1080, %v1081, %v1073
      %v1083 = vsel %vm1076, %v1079, %v1082
      %v1084 = vsel %vm1074, nan, %v1083
      %v1085 = vand.u32 2147483647, %v312
      %vm1086 = vcmp.le.f32.partialorder %v1085, 0.7853982
      %vm1087 = vcmp.lt.s32.totalorder %v312, 0
      %v1088 = vand.u32 %v312, 2139095040
      %v1089 = vshrl.u32 %v1088, 23
      %v1090 = vsub.s32 %v1089, 127
      %v1091 = vand.u32 2147483647, %v312
      %v1092 = vand.u32 %v1091, 8388607
      %v1093 = vor.u32 %v1092, 8388608
      %v1094 = vsub.s32 0, %v1093
      %v1095 = vadd.s32 %v1090, 1
      %vm1096 = vcmp.gt.s32.totalorder %v1095, 0
      %v1097 = vsel %vm1096, %v1095, 0
      %v1098 = vshrl.u32 %v1097, 5
      %v1099 = vand.u32 %v1097, 31
      %v1100 = vsub.s32 32, %v1099
      %v1101 = vshrl.u32 683565275, %v1100
      %v1102 = vshll.u32 683565275, %v1099
      %v1103 = vshrl.u32 2475754826, %v1100
      %v1104 = vor.u32 %v1102, %v1103
      %v1105 = vshll.u32 2475754826, %v1099
      %v1106 = vshrl.u32 2131351028, %v1100
      %v1107 = vor.u32 %v1105, %v1106
      %v1108 = vshll.u32 2131351028, %v1099
      %v1109 = vshrl.u32 2102212464, %v1100
      %v1110 = vor.u32 %v1108, %v1109
      %v1111 = vshll.u32 2102212464, %v1099
      %v1112 = vshrl.u32 920167782, %v1100
      %v1113 = vor.u32 %v1111, %v1112
      %v1114 = vshll.u32 920167782, %v1099
      %v1115 = vshrl.u32 1326507024, %v1100
      %v1116 = vor.u32 %v1114, %v1115
      %vm1117 = vcmp.lt.s32.totalorder %v1098, 1
      %vm1118 = vcmp.lt.s32.totalorder %v1098, 2
      %vm1119 = vcmp.lt.s32.totalorder %v1098, 3
      %vm1120 = vcmp.lt.s32.totalorder %v1098, 4
      %v1121 = vsel %vm1117, %v1101, %v1104
      %v1122 = vsel %vm1120, %v1110, 2102212464
      %v1123 = vsel %vm1119, %v1107, %v1122
      %v1124 = vsel %vm1118, %v1121, %v1123
      %v1125 = vsel %vm1117, %v1104, %v1107
      %v1126 = vsel %vm1120, %v1113, 920167782
      %v1127 = vsel %vm1119, %v1110, %v1126
      %v1128 = vsel %vm1118, %v1125, %v1127
      %v1129 = vsel %vm1117, %v1107, %v1110
      %v1130 = vsel %vm1120, %v1116, 1326507024
      %v1131 = vsel %vm1119, %v1113, %v1130
      %v1132 = vsel %vm1118, %v1129, %v1131
      %v1133 = vshll.u32 %v1093, 8
      %v1134 = vand.u32 %v1133, 65535
      %v1135 = vshrl.u32 %v1133, 16
      %v1136 = vand.u32 %v1132, 65535
      %v1137 = vshrl.u32 %v1132, 16
      %v1138 = vmul.u32 %v1134, %v1136
      %v1139 = vmul.u32 %v1134, %v1137
      %v1140 = vmul.u32 %v1135, %v1136
      %v1141 = vmul.u32 %v1135, %v1137
      %v1142 = vshll.u32 %v1139, 16
      %v1143 = vshrl.u32 %v1139, 16
      %v1144 = vshll.u32 %v1140, 16
      %v1145 = vshrl.u32 %v1140, 16
      %vm1146 = vc.u32 %v1138, %v1142
      %v1147 = vsel %vm1146, 1, 0
      %v1148 = vadd.s32 %v1138, %v1142
      %v1149 = vadd.s32 %v1141, %v1147
      %vm1150 = vc.u32 %v1148, %v1144
      %v1151 = vsel %vm1150, 1, 0
      %v1152 = vadd.s32 %v1148, %v1144
      %v1153 = vadd.s32 %v1149, %v1151
      %v1154 = vadd.s32 %v1153, %v1143
      %v1155 = vadd.s32 %v1154, %v1145
      %v1156 = vand.u32 %v1133, 65535
      %v1157 = vshrl.u32 %v1133, 16
      %v1158 = vand.u32 %v1128, 65535
      %v1159 = vshrl.u32 %v1128, 16
      %v1160 = vmul.u32 %v1156, %v1158
      %v1161 = vmul.u32 %v1156, %v1159
      %v1162 = vmul.u32 %v1157, %v1158
      %v1163 = vmul.u32 %v1157, %v1159
      %v1164 = vshll.u32 %v1161, 16
      %v1165 = vshrl.u32 %v1161, 16
      %v1166 = vshll.u32 %v1162, 16
      %v1167 = vshrl.u32 %v1162, 16
      %vm1168 = vc.u32 %v1160, %v1164
      %v1169 = vsel %vm1168, 1, 0
      %v1170 = vadd.s32 %v1160, %v1164
      %v1171 = vadd.s32 %v1163, %v1169
      %vm1172 = vc.u32 %v1170, %v1166
      %v1173 = vsel %vm1172, 1, 0
      %v1174 = vadd.s32 %v1170, %v1166
      %v1175 = vadd.s32 %v1171, %v1173
      %v1176 = vadd.s32 %v1175, %v1165
      %v1177 = vadd.s32 %v1176, %v1167
      %v1178 = vmul.u32 %v1133, %v1124
      %v1179 = vadd.s32 %v1155, %v1174
      %vm1180 = vc.u32 %v1155, %v1174
      %v1181 = vadd.s32 %v1177, 1
      %v1182 = vsel %vm1180, %v1181, %v1177
      %v1183 = vadd.s32 %v1178, %v1182
      %v1184 = vadd.s32 %v1183, 536870912
      %v1185 = vshrl.u32 %v1184, 30
      %v1186 = vshll.u32 %v1185, 30
      %v1187 = vsub.s32 %v1183, %v1186
      %vm1188 = vcmp.lt.s32.totalorder %v1187, 0
      %v1189 = vsub.s32 0, %v1187
      %v1190 = vsel %vm1188, %v1189, %v1187
      %v1191 = vclz %v1190
      %v1192 = vsub.s32 %v1191, 2
      %vm1193 = vcmp.gt.s32.totalorder 0, %v1192
      %v1194 = vsel %vm1193, 0, %v1192
      %v1195 = vsub.s32 32, %v1194
      %v1196 = vshll.u32 %v1187, %v1194
      %v1197 = vshrl.u32 %v1179, %v1195
      %v1198 = vor.u32 %v1196, %v1197
      %v1199 = vsub.s32 4294967266, %v1194
      %v1200 = vadd.s32 %v1199, 127
      %v1201 = vshll.u32 %v1200, 23
      %v1202 = vor.u32 4788187, %v1201
      %v1203 = vand.u32 2147483647, %v1202
      %v1205 = vcvt.s32.f32 %v1198
      %v1206 = vmul.f32 %v1205, %v1203
      %v1207 = vxor.u32 %v1206, 2147483648
      %v1208 = vsel %vm1087, %v1207, %v1206
      %v1209 = vsub.s32 4, %v1185
      %v1210 = vsel %vm1087, %v1209, %v1185
      %v1211 = vsel %vm1086, %v312, %v1208
      %v1212 = vsel %vm1086, 0, %v1210
      %v1213 = vmul.f32 %v1211, %v1211
      %v1214 = vmul.f32 %v1213, -0.001358992
      %v1215 = vadd.f32 %v1214, 0.041655596
      %v1216 = vmul.f32 %v1213, %v1215
      %v1217 = vadd.f32 %v1216, -0.4999988
      %v1218 = vmul.f32 %v1213, %v1217
      %v1219 = vadd.f32 1.0, %v1218
      %v1220 = vmul.f32 %v1211, %v1211
      %v1221 = vmul.f32 %v1220, -0.00019511016
      %v1222 = vadd.f32 %v1221, 0.008332121
      %v1223 = vmul.f32 %v1220, %v1222
      %v1224 = vadd.f32 %v1223, -0.16666654
      %v1225 = vmul.f32 %v1220, %v1224
      %v1226 = vadd.f32 %v1225, 1.0
      %v1227 = vmul.f32 %v1226, %v1211
      %vm1228 = vweird.f32 %v312
      %v1229 = vand.u32 %v1212, 3
      %vm1230 = vcmp.lt.s32.totalorder %v1229, 2
      %vm1231 = vcmp.eq.s32.totalorder %v1229, 0
      %v1232 = vxor.u32 %v1227, 2147483648
      %v1233 = vsel %vm1231, %v1219, %v1232
      %vm1234 = vcmp.eq.s32.totalorder %v1229, 2
      %v1235 = vxor.u32 %v1219, 2147483648
      %v1236 = vsel %vm1234, %v1235, %v1227
      %v1237 = vsel %vm1230, %v1233, %v1236
      %v1238 = vsel %vm1228, nan, %v1237
      %v1239 = vand.u32 2147483647, %v313
      %vm1240 = vcmp.le.f32.partialorder %v1239, 0.7853982
      %vm1241 = vcmp.lt.s32.totalorder %v313, 0
      %v1242 = vand.u32 %v313, 2139095040
      %v1243 = vshrl.u32 %v1242, 23
      %v1244 = vsub.s32 %v1243, 127
      %v1245 = vand.u32 2147483647, %v313
      %v1246 = vand.u32 %v1245, 8388607
      %v1247 = vor.u32 %v1246, 8388608
      %v1248 = vsub.s32 0, %v1247
      %v1249 = vadd.s32 %v1244, 1
      %vm1250 = vcmp.gt.s32.totalorder %v1249, 0
      %v1251 = vsel %vm1250, %v1249, 0
      %v1252 = vshrl.u32 %v1251, 5
      %v1253 = vand.u32 %v1251, 31
      %v1254 = vsub.s32 32, %v1253
      %v1255 = vshrl.u32 683565275, %v1254
      %v1256 = vshll.u32 683565275, %v1253
      %v1257 = vshrl.u32 2475754826, %v1254
      %v1258 = vor.u32 %v1256, %v1257
      %v1259 = vshll.u32 2475754826, %v1253
      %v1260 = vshrl.u32 2131351028, %v1254
      %v1261 = vor.u32 %v1259, %v1260
      %v1262 = vshll.u32 2131351028, %v1253
      %v1263 = vshrl.u32 2102212464, %v1254
      %v1264 = vor.u32 %v1262, %v1263
      %v1265 = vshll.u32 2102212464, %v1253
      %v1266 = vshrl.u32 920167782, %v1254
      %v1267 = vor.u32 %v1265, %v1266
      %v1268 = vshll.u32 920167782, %v1253
      %v1269 = vshrl.u32 1326507024, %v1254
      %v1270 = vor.u32 %v1268, %v1269
      %vm1271 = vcmp.lt.s32.totalorder %v1252, 1
      %vm1272 = vcmp.lt.s32.totalorder %v1252, 2
      %vm1273 = vcmp.lt.s32.totalorder %v1252, 3
      %vm1274 = vcmp.lt.s32.totalorder %v1252, 4
      %v1275 = vsel %vm1271, %v1255, %v1258
      %v1276 = vsel %vm1274, %v1264, 2102212464
      %v1277 = vsel %vm1273, %v1261, %v1276
      %v1278 = vsel %vm1272, %v1275, %v1277
      %v1279 = vsel %vm1271, %v1258, %v1261
      %v1280 = vsel %vm1274, %v1267, 920167782
      %v1281 = vsel %vm1273, %v1264, %v1280
      %v1282 = vsel %vm1272, %v1279, %v1281
      %v1283 = vsel %vm1271, %v1261, %v1264
      %v1284 = vsel %vm1274, %v1270, 1326507024
      %v1285 = vsel %vm1273, %v1267, %v1284
      %v1286 = vsel %vm1272, %v1283, %v1285
      %v1287 = vshll.u32 %v1247, 8
      %v1288 = vand.u32 %v1287, 65535
      %v1289 = vshrl.u32 %v1287, 16
      %v1290 = vand.u32 %v1286, 65535
      %v1291 = vshrl.u32 %v1286, 16
      %v1292 = vmul.u32 %v1288, %v1290
      %v1293 = vmul.u32 %v1288, %v1291
      %v1294 = vmul.u32 %v1289, %v1290
      %v1295 = vmul.u32 %v1289, %v1291
      %v1296 = vshll.u32 %v1293, 16
      %v1297 = vshrl.u32 %v1293, 16
      %v1298 = vshll.u32 %v1294, 16
      %v1299 = vshrl.u32 %v1294, 16
      %vm1300 = vc.u32 %v1292, %v1296
      %v1301 = vsel %vm1300, 1, 0
      %v1302 = vadd.s32 %v1292, %v1296
      %v1303 = vadd.s32 %v1295, %v1301
      %vm1304 = vc.u32 %v1302, %v1298
      %v1305 = vsel %vm1304, 1, 0
      %v1306 = vadd.s32 %v1302, %v1298
      %v1307 = vadd.s32 %v1303, %v1305
      %v1308 = vadd.s32 %v1307, %v1297
      %v1309 = vadd.s32 %v1308, %v1299
      %v1310 = vand.u32 %v1287, 65535
      %v1311 = vshrl.u32 %v1287, 16
      %v1312 = vand.u32 %v1282, 65535
      %v1313 = vshrl.u32 %v1282, 16
      %v1314 = vmul.u32 %v1310, %v1312
      %v1315 = vmul.u32 %v1310, %v1313
      %v1316 = vmul.u32 %v1311, %v1312
      %v1317 = vmul.u32 %v1311, %v1313
      %v1318 = vshll.u32 %v1315, 16
      %v1319 = vshrl.u32 %v1315, 16
      %v1320 = vshll.u32 %v1316, 16
      %v1321 = vshrl.u32 %v1316, 16
      %vm1322 = vc.u32 %v1314, %v1318
      %v1323 = vsel %vm1322, 1, 0
      %v1324 = vadd.s32 %v1314, %v1318
      %v1325 = vadd.s32 %v1317, %v1323
      %vm1326 = vc.u32 %v1324, %v1320
      %v1327 = vsel %vm1326, 1, 0
      %v1328 = vadd.s32 %v1324, %v1320
      %v1329 = vadd.s32 %v1325, %v1327
      %v1330 = vadd.s32 %v1329, %v1319
      %v1331 = vadd.s32 %v1330, %v1321
      %v1332 = vmul.u32 %v1287, %v1278
      %v1333 = vadd.s32 %v1309, %v1328
      %vm1334 = vc.u32 %v1309, %v1328
      %v1335 = vadd.s32 %v1331, 1
      %v1336 = vsel %vm1334, %v1335, %v1331
      %v1337 = vadd.s32 %v1332, %v1336
      %v1338 = vadd.s32 %v1337, 536870912
      %v1339 = vshrl.u32 %v1338, 30
      %v1340 = vshll.u32 %v1339, 30
      %v1341 = vsub.s32 %v1337, %v1340
      %vm1342 = vcmp.lt.s32.totalorder %v1341, 0
      %v1343 = vsub.s32 0, %v1341
      %v1344 = vsel %vm1342, %v1343, %v1341
      %v1345 = vclz %v1344
      %v1346 = vsub.s32 %v1345, 2
      %vm1347 = vcmp.gt.s32.totalorder 0, %v1346
      %v1348 = vsel %vm1347, 0, %v1346
      %v1349 = vsub.s32 32, %v1348
      %v1350 = vshll.u32 %v1341, %v1348
      %v1351 = vshrl.u32 %v1333, %v1349
      %v1352 = vor.u32 %v1350, %v1351
      %v1353 = vsub.s32 4294967266, %v1348
      %v1354 = vadd.s32 %v1353, 127
      %v1355 = vshll.u32 %v1354, 23
      %v1356 = vor.u32 4788187, %v1355
      %v1357 = vand.u32 2147483647, %v1356
      %v1359 = vcvt.s32.f32 %v1352
      %v1360 = vmul.f32 %v1359, %v1357
      %v1361 = vxor.u32 %v1360, 2147483648
      %v1362 = vsel %vm1241, %v1361, %v1360
      %v1363 = vsub.s32 4, %v1339
      %v1364 = vsel %vm1241, %v1363, %v1339
      %v1365 = vsel %vm1240, %v313, %v1362
      %v1366 = vsel %vm1240, 0, %v1364
      %v1367 = vmul.f32 %v1365, %v1365
      %v1368 = vmul.f32 %v1367, -0.001358992
      %v1369 = vadd.f32 %v1368, 0.041655596
      %v1370 = vmul.f32 %v1367, %v1369
      %v1371 = vadd.f32 %v1370, -0.4999988
      %v1372 = vmul.f32 %v1367, %v1371
      %v1373 = vadd.f32 1.0, %v1372
      %v1374 = vmul.f32 %v1365, %v1365
      %v1375 = vmul.f32 %v1374, -0.00019511016
      %v1376 = vadd.f32 %v1375, 0.008332121
      %v1377 = vmul.f32 %v1374, %v1376
      %v1378 = vadd.f32 %v1377, -0.16666654
      %v1379 = vmul.f32 %v1374, %v1378
      %v1380 = vadd.f32 %v1379, 1.0
      %v1381 = vmul.f32 %v1380, %v1365
      %vm1382 = vweird.f32 %v313
      %v1383 = vand.u32 %v1366, 3
      %vm1384 = vcmp.lt.s32.totalorder %v1383, 2
      %vm1385 = vcmp.eq.s32.totalorder %v1383, 0
      %v1386 = vxor.u32 %v1381, 2147483648
      %v1387 = vsel %vm1385, %v1373, %v1386
      %vm1388 = vcmp.eq.s32.totalorder %v1383, 2
      %v1389 = vxor.u32 %v1373, 2147483648
      %v1390 = vsel %vm1388, %v1389, %v1381
      %v1391 = vsel %vm1384, %v1387, %v1390
      %v1392 = vsel %vm1382, nan, %v1391
      %v1393 = vand.u32 2147483647, %v314
      %vm1394 = vcmp.le.f32.partialorder %v1393, 0.7853982
      %vm1395 = vcmp.lt.s32.totalorder %v314, 0
      %v1396 = vand.u32 %v314, 2139095040
      %v1397 = vshrl.u32 %v1396, 23
      %v1398 = vsub.s32 %v1397, 127
      %v1399 = vand.u32 2147483647, %v314
      %v1400 = vand.u32 %v1399, 8388607
      %v1401 = vor.u32 %v1400, 8388608
      %v1402 = vsub.s32 0, %v1401
      %v1403 = vadd.s32 %v1398, 1
      %vm1404 = vcmp.gt.s32.totalorder %v1403, 0
      %v1405 = vsel %vm1404, %v1403, 0
      %v1406 = vshrl.u32 %v1405, 5
      %v1407 = vand.u32 %v1405, 31
      %v1408 = vsub.s32 32, %v1407
      %v1409 = vshrl.u32 683565275, %v1408
      %v1410 = vshll.u32 683565275, %v1407
      %v1411 = vshrl.u32 2475754826, %v1408
      %v1412 = vor.u32 %v1410, %v1411
      %v1413 = vshll.u32 2475754826, %v1407
      %v1414 = vshrl.u32 2131351028, %v1408
      %v1415 = vor.u32 %v1413, %v1414
      %v1416 = vshll.u32 2131351028, %v1407
      %v1417 = vshrl.u32 2102212464, %v1408
      %v1418 = vor.u32 %v1416, %v1417
      %v1419 = vshll.u32 2102212464, %v1407
      %v1420 = vshrl.u32 920167782, %v1408
      %v1421 = vor.u32 %v1419, %v1420
      %v1422 = vshll.u32 920167782, %v1407
      %v1423 = vshrl.u32 1326507024, %v1408
      %v1424 = vor.u32 %v1422, %v1423
      %vm1425 = vcmp.lt.s32.totalorder %v1406, 1
      %vm1426 = vcmp.lt.s32.totalorder %v1406, 2
      %vm1427 = vcmp.lt.s32.totalorder %v1406, 3
      %vm1428 = vcmp.lt.s32.totalorder %v1406, 4
      %v1429 = vsel %vm1425, %v1409, %v1412
      %v1430 = vsel %vm1428, %v1418, 2102212464
      %v1431 = vsel %vm1427, %v1415, %v1430
      %v1432 = vsel %vm1426, %v1429, %v1431
      %v1433 = vsel %vm1425, %v1412, %v1415
      %v1434 = vsel %vm1428, %v1421, 920167782
      %v1435 = vsel %vm1427, %v1418, %v1434
      %v1436 = vsel %vm1426, %v1433, %v1435
      %v1437 = vsel %vm1425, %v1415, %v1418
      %v1438 = vsel %vm1428, %v1424, 1326507024
      %v1439 = vsel %vm1427, %v1421, %v1438
      %v1440 = vsel %vm1426, %v1437, %v1439
      %v1441 = vshll.u32 %v1401, 8
      %v1442 = vand.u32 %v1441, 65535
      %v1443 = vshrl.u32 %v1441, 16
      %v1444 = vand.u32 %v1440, 65535
      %v1445 = vshrl.u32 %v1440, 16
      %v1446 = vmul.u32 %v1442, %v1444
      %v1447 = vmul.u32 %v1442, %v1445
      %v1448 = vmul.u32 %v1443, %v1444
      %v1449 = vmul.u32 %v1443, %v1445
      %v1450 = vshll.u32 %v1447, 16
      %v1451 = vshrl.u32 %v1447, 16
      %v1452 = vshll.u32 %v1448, 16
      %v1453 = vshrl.u32 %v1448, 16
      %vm1454 = vc.u32 %v1446, %v1450
      %v1455 = vsel %vm1454, 1, 0
      %v1456 = vadd.s32 %v1446, %v1450
      %v1457 = vadd.s32 %v1449, %v1455
      %vm1458 = vc.u32 %v1456, %v1452
      %v1459 = vsel %vm1458, 1, 0
      %v1460 = vadd.s32 %v1456, %v1452
      %v1461 = vadd.s32 %v1457, %v1459
      %v1462 = vadd.s32 %v1461, %v1451
      %v1463 = vadd.s32 %v1462, %v1453
      %v1464 = vand.u32 %v1441, 65535
      %v1465 = vshrl.u32 %v1441, 16
      %v1466 = vand.u32 %v1436, 65535
      %v1467 = vshrl.u32 %v1436, 16
      %v1468 = vmul.u32 %v1464, %v1466
      %v1469 = vmul.u32 %v1464, %v1467
      %v1470 = vmul.u32 %v1465, %v1466
      %v1471 = vmul.u32 %v1465, %v1467
      %v1472 = vshll.u32 %v1469, 16
      %v1473 = vshrl.u32 %v1469, 16
      %v1474 = vshll.u32 %v1470, 16
      %v1475 = vshrl.u32 %v1470, 16
      %vm1476 = vc.u32 %v1468, %v1472
      %v1477 = vsel %vm1476, 1, 0
      %v1478 = vadd.s32 %v1468, %v1472
      %v1479 = vadd.s32 %v1471, %v1477
      %vm1480 = vc.u32 %v1478, %v1474
      %v1481 = vsel %vm1480, 1, 0
      %v1482 = vadd.s32 %v1478, %v1474
      %v1483 = vadd.s32 %v1479, %v1481
      %v1484 = vadd.s32 %v1483, %v1473
      %v1485 = vadd.s32 %v1484, %v1475
      %v1486 = vmul.u32 %v1441, %v1432
      %v1487 = vadd.s32 %v1463, %v1482
      %vm1488 = vc.u32 %v1463, %v1482
      %v1489 = vadd.s32 %v1485, 1
      %v1490 = vsel %vm1488, %v1489, %v1485
      %v1491 = vadd.s32 %v1486, %v1490
      %v1492 = vadd.s32 %v1491, 536870912
      %v1493 = vshrl.u32 %v1492, 30
      %v1494 = vshll.u32 %v1493, 30
      %v1495 = vsub.s32 %v1491, %v1494
      %vm1496 = vcmp.lt.s32.totalorder %v1495, 0
      %v1497 = vsub.s32 0, %v1495
      %v1498 = vsel %vm1496, %v1497, %v1495
      %v1499 = vclz %v1498
      %v1500 = vsub.s32 %v1499, 2
      %vm1501 = vcmp.gt.s32.totalorder 0, %v1500
      %v1502 = vsel %vm1501, 0, %v1500
      %v1503 = vsub.s32 32, %v1502
      %v1504 = vshll.u32 %v1495, %v1502
      %v1505 = vshrl.u32 %v1487, %v1503
      %v1506 = vor.u32 %v1504, %v1505
      %v1507 = vsub.s32 4294967266, %v1502
      %v1508 = vadd.s32 %v1507, 127
      %v1509 = vshll.u32 %v1508, 23
      %v1510 = vor.u32 4788187, %v1509
      %v1511 = vand.u32 2147483647, %v1510
      %v1513 = vcvt.s32.f32 %v1506
      %v1514 = vmul.f32 %v1513, %v1511
      %v1515 = vxor.u32 %v1514, 2147483648
      %v1516 = vsel %vm1395, %v1515, %v1514
      %v1517 = vsub.s32 4, %v1493
      %v1518 = vsel %vm1395, %v1517, %v1493
      %v1519 = vsel %vm1394, %v314, %v1516
      %v1520 = vsel %vm1394, 0, %v1518
      %v1521 = vmul.f32 %v1519, %v1519
      %v1522 = vmul.f32 %v1521, -0.001358992
      %v1523 = vadd.f32 %v1522, 0.041655596
      %v1524 = vmul.f32 %v1521, %v1523
      %v1525 = vadd.f32 %v1524, -0.4999988
      %v1526 = vmul.f32 %v1521, %v1525
      %v1527 = vadd.f32 1.0, %v1526
      %v1528 = vmul.f32 %v1519, %v1519
      %v1529 = vmul.f32 %v1528, -0.00019511016
      %v1530 = vadd.f32 %v1529, 0.008332121
      %v1531 = vmul.f32 %v1528, %v1530
      %v1532 = vadd.f32 %v1531, -0.16666654
      %v1533 = vmul.f32 %v1528, %v1532
      %v1534 = vadd.f32 %v1533, 1.0
      %v1535 = vmul.f32 %v1534, %v1519
      %vm1536 = vweird.f32 %v314
      %v1537 = vand.u32 %v1520, 3
      %vm1538 = vcmp.lt.s32.totalorder %v1537, 2
      %vm1539 = vcmp.eq.s32.totalorder %v1537, 0
      %v1540 = vxor.u32 %v1535, 2147483648
      %v1541 = vsel %vm1539, %v1527, %v1540
      %vm1542 = vcmp.eq.s32.totalorder %v1537, 2
      %v1543 = vxor.u32 %v1527, 2147483648
      %v1544 = vsel %vm1542, %v1543, %v1535
      %v1545 = vsel %vm1538, %v1541, %v1544
      %v1546 = vsel %vm1536, nan, %v1545
      %1547 = vset.pattern.permute.xlu0 65
      %1548 = vperm.xlu0 %1547, %v255
      %v1549 = vpop.permute.xlu0 %1548
      %1551 = vset.pattern.permute.xlu0 65
      %1552 = vperm.xlu0 %1551, %v256
      %v1553 = vpop.permute.xlu0 %1552
      %1555 = vset.pattern.permute.xlu0 65
      %1556 = vperm.xlu0 %1555, %v257
      %v1557 = vpop.permute.xlu0 %1556
      %1559 = vset.pattern.permute.xlu0 65
      %1560 = vperm.xlu0 %1559, %v258
      %v1561 = vpop.permute.xlu0 %1560
      %1563 = vset.pattern.permute.xlu0 65
      %1564 = vperm.xlu0 %1563, %v259
      %v1565 = vpop.permute.xlu0 %1564
      %1567 = vset.pattern.permute.xlu0 65
      %1568 = vperm.xlu0 %1567, %v260
      %v1569 = vpop.permute.xlu0 %1568
      %1571 = vset.pattern.permute.xlu0 65
      %1572 = vperm.xlu0 %1571, %v261
      %v1573 = vpop.permute.xlu0 %1572
      %1575 = vset.pattern.permute.xlu0 65
      %1576 = vperm.xlu0 %1575, %v262
      %v1577 = vpop.permute.xlu0 %1576
      %v1579 = vmul.f32 %v1549, %v305
      %v1580 = vmul.f32 %v1553, %v305
      %v1581 = vmul.f32 %v1557, %v305
      %v1582 = vmul.f32 %v1561, %v305
      %v1583 = vmul.f32 %v1565, %v305
      %v1584 = vmul.f32 %v1569, %v305
      %v1585 = vmul.f32 %v1573, %v305
      %v1586 = vmul.f32 %v1577, %v305
      %v1587 = vand.u32 2147483647, %v1579
      %vm1588 = vcmp.le.f32.partialorder %v1587, 0.7853982
      %vm1589 = vcmp.lt.s32.totalorder %v1579, 0
      %v1590 = vand.u32 %v1579, 2139095040
      %v1591 = vshrl.u32 %v1590, 23
      %v1592 = vsub.s32 %v1591, 127
      %v1593 = vand.u32 2147483647, %v1579
      %v1594 = vand.u32 %v1593, 8388607
      %v1595 = vor.u32 %v1594, 8388608
      %v1596 = vsub.s32 0, %v1595
      %v1597 = vadd.s32 %v1592, 1
      %vm1598 = vcmp.gt.s32.totalorder %v1597, 0
      %v1599 = vsel %vm1598, %v1597, 0
      %v1600 = vshrl.u32 %v1599, 5
      %v1601 = vand.u32 %v1599, 31
      %v1602 = vsub.s32 32, %v1601
      %v1603 = vshrl.u32 683565275, %v1602
      %v1604 = vshll.u32 683565275, %v1601
      %v1605 = vshrl.u32 2475754826, %v1602
      %v1606 = vor.u32 %v1604, %v1605
      %v1607 = vshll.u32 2475754826, %v1601
      %v1608 = vshrl.u32 2131351028, %v1602
      %v1609 = vor.u32 %v1607, %v1608
      %v1610 = vshll.u32 2131351028, %v1601
      %v1611 = vshrl.u32 2102212464, %v1602
      %v1612 = vor.u32 %v1610, %v1611
      %v1613 = vshll.u32 2102212464, %v1601
      %v1614 = vshrl.u32 920167782, %v1602
      %v1615 = vor.u32 %v1613, %v1614
      %v1616 = vshll.u32 920167782, %v1601
      %v1617 = vshrl.u32 1326507024, %v1602
      %v1618 = vor.u32 %v1616, %v1617
      %vm1619 = vcmp.lt.s32.totalorder %v1600, 1
      %vm1620 = vcmp.lt.s32.totalorder %v1600, 2
      %vm1621 = vcmp.lt.s32.totalorder %v1600, 3
      %vm1622 = vcmp.lt.s32.totalorder %v1600, 4
      %v1623 = vsel %vm1619, %v1603, %v1606
      %v1624 = vsel %vm1622, %v1612, 2102212464
      %v1625 = vsel %vm1621, %v1609, %v1624
      %v1626 = vsel %vm1620, %v1623, %v1625
      %v1627 = vsel %vm1619, %v1606, %v1609
      %v1628 = vsel %vm1622, %v1615, 920167782
      %v1629 = vsel %vm1621, %v1612, %v1628
      %v1630 = vsel %vm1620, %v1627, %v1629
      %v1631 = vsel %vm1619, %v1609, %v1612
      %v1632 = vsel %vm1622, %v1618, 1326507024
      %v1633 = vsel %vm1621, %v1615, %v1632
      %v1634 = vsel %vm1620, %v1631, %v1633
      %v1635 = vshll.u32 %v1595, 8
      %v1636 = vand.u32 %v1635, 65535
      %v1637 = vshrl.u32 %v1635, 16
      %v1638 = vand.u32 %v1634, 65535
      %v1639 = vshrl.u32 %v1634, 16
      %v1640 = vmul.u32 %v1636, %v1638
      %v1641 = vmul.u32 %v1636, %v1639
      %v1642 = vmul.u32 %v1637, %v1638
      %v1643 = vmul.u32 %v1637, %v1639
      %v1644 = vshll.u32 %v1641, 16
      %v1645 = vshrl.u32 %v1641, 16
      %v1646 = vshll.u32 %v1642, 16
      %v1647 = vshrl.u32 %v1642, 16
      %vm1648 = vc.u32 %v1640, %v1644
      %v1649 = vsel %vm1648, 1, 0
      %v1650 = vadd.s32 %v1640, %v1644
      %v1651 = vadd.s32 %v1643, %v1649
      %vm1652 = vc.u32 %v1650, %v1646
      %v1653 = vsel %vm1652, 1, 0
      %v1654 = vadd.s32 %v1650, %v1646
      %v1655 = vadd.s32 %v1651, %v1653
      %v1656 = vadd.s32 %v1655, %v1645
      %v1657 = vadd.s32 %v1656, %v1647
      %v1658 = vand.u32 %v1635, 65535
      %v1659 = vshrl.u32 %v1635, 16
      %v1660 = vand.u32 %v1630, 65535
      %v1661 = vshrl.u32 %v1630, 16
      %v1662 = vmul.u32 %v1658, %v1660
      %v1663 = vmul.u32 %v1658, %v1661
      %v1664 = vmul.u32 %v1659, %v1660
      %v1665 = vmul.u32 %v1659, %v1661
      %v1666 = vshll.u32 %v1663, 16
      %v1667 = vshrl.u32 %v1663, 16
      %v1668 = vshll.u32 %v1664, 16
      %v1669 = vshrl.u32 %v1664, 16
      %vm1670 = vc.u32 %v1662, %v1666
      %v1671 = vsel %vm1670, 1, 0
      %v1672 = vadd.s32 %v1662, %v1666
      %v1673 = vadd.s32 %v1665, %v1671
      %vm1674 = vc.u32 %v1672, %v1668
      %v1675 = vsel %vm1674, 1, 0
      %v1676 = vadd.s32 %v1672, %v1668
      %v1677 = vadd.s32 %v1673, %v1675
      %v1678 = vadd.s32 %v1677, %v1667
      %v1679 = vadd.s32 %v1678, %v1669
      %v1680 = vmul.u32 %v1635, %v1626
      %v1681 = vadd.s32 %v1657, %v1676
      %vm1682 = vc.u32 %v1657, %v1676
      %v1683 = vadd.s32 %v1679, 1
      %v1684 = vsel %vm1682, %v1683, %v1679
      %v1685 = vadd.s32 %v1680, %v1684
      %v1686 = vadd.s32 %v1685, 536870912
      %v1687 = vshrl.u32 %v1686, 30
      %v1688 = vshll.u32 %v1687, 30
      %v1689 = vsub.s32 %v1685, %v1688
      %vm1690 = vcmp.lt.s32.totalorder %v1689, 0
      %v1691 = vsub.s32 0, %v1689
      %v1692 = vsel %vm1690, %v1691, %v1689
      %v1693 = vclz %v1692
      %v1694 = vsub.s32 %v1693, 2
      %vm1695 = vcmp.gt.s32.totalorder 0, %v1694
      %v1696 = vsel %vm1695, 0, %v1694
      %v1697 = vsub.s32 32, %v1696
      %v1698 = vshll.u32 %v1689, %v1696
      %v1699 = vshrl.u32 %v1681, %v1697
      %v1700 = vor.u32 %v1698, %v1699
      %v1701 = vsub.s32 4294967266, %v1696
      %v1702 = vadd.s32 %v1701, 127
      %v1703 = vshll.u32 %v1702, 23
      %v1704 = vor.u32 4788187, %v1703
      %v1705 = vand.u32 2147483647, %v1704
      %v1707 = vcvt.s32.f32 %v1700
      %v1708 = vmul.f32 %v1707, %v1705
      %v1709 = vxor.u32 %v1708, 2147483648
      %v1710 = vsel %vm1589, %v1709, %v1708
      %v1711 = vsub.s32 4, %v1687
      %v1712 = vsel %vm1589, %v1711, %v1687
      %v1713 = vsel %vm1588, %v1579, %v1710
      %v1714 = vsel %vm1588, 0, %v1712
      %v1715 = vmul.f32 %v1713, %v1713
      %v1716 = vmul.f32 %v1715, -0.001358992
      %v1717 = vadd.f32 %v1716, 0.041655596
      %v1718 = vmul.f32 %v1715, %v1717
      %v1719 = vadd.f32 %v1718, -0.4999988
      %v1720 = vmul.f32 %v1715, %v1719
      %v1721 = vadd.f32 1.0, %v1720
      %v1722 = vmul.f32 %v1713, %v1713
      %v1723 = vmul.f32 %v1722, -0.00019511016
      %v1724 = vadd.f32 %v1723, 0.008332121
      %v1725 = vmul.f32 %v1722, %v1724
      %v1726 = vadd.f32 %v1725, -0.16666654
      %v1727 = vmul.f32 %v1722, %v1726
      %v1728 = vadd.f32 %v1727, 1.0
      %v1729 = vmul.f32 %v1728, %v1713
      %vm1730 = vweird.f32 %v1579
      %v1731 = vand.u32 %v1714, 3
      %vm1732 = vcmp.lt.s32.totalorder %v1731, 2
      %vm1733 = vcmp.eq.s32.totalorder %v1731, 0
      %v1734 = vxor.u32 %v1729, 2147483648
      %v1735 = vsel %vm1733, %v1721, %v1734
      %vm1736 = vcmp.eq.s32.totalorder %v1731, 2
      %v1737 = vxor.u32 %v1721, 2147483648
      %v1738 = vsel %vm1736, %v1737, %v1729
      %v1739 = vsel %vm1732, %v1735, %v1738
      %v1740 = vsel %vm1730, nan, %v1739
      %v1741 = vand.u32 2147483647, %v1580
      %vm1742 = vcmp.le.f32.partialorder %v1741, 0.7853982
      %vm1743 = vcmp.lt.s32.totalorder %v1580, 0
      %v1744 = vand.u32 %v1580, 2139095040
      %v1745 = vshrl.u32 %v1744, 23
      %v1746 = vsub.s32 %v1745, 127
      %v1747 = vand.u32 2147483647, %v1580
      %v1748 = vand.u32 %v1747, 8388607
      %v1749 = vor.u32 %v1748, 8388608
      %v1750 = vsub.s32 0, %v1749
      %v1751 = vadd.s32 %v1746, 1
      %vm1752 = vcmp.gt.s32.totalorder %v1751, 0
      %v1753 = vsel %vm1752, %v1751, 0
      %v1754 = vshrl.u32 %v1753, 5
      %v1755 = vand.u32 %v1753, 31
      %v1756 = vsub.s32 32, %v1755
      %v1757 = vshrl.u32 683565275, %v1756
      %v1758 = vshll.u32 683565275, %v1755
      %v1759 = vshrl.u32 2475754826, %v1756
      %v1760 = vor.u32 %v1758, %v1759
      %v1761 = vshll.u32 2475754826, %v1755
      %v1762 = vshrl.u32 2131351028, %v1756
      %v1763 = vor.u32 %v1761, %v1762
      %v1764 = vshll.u32 2131351028, %v1755
      %v1765 = vshrl.u32 2102212464, %v1756
      %v1766 = vor.u32 %v1764, %v1765
      %v1767 = vshll.u32 2102212464, %v1755
      %v1768 = vshrl.u32 920167782, %v1756
      %v1769 = vor.u32 %v1767, %v1768
      %v1770 = vshll.u32 920167782, %v1755
      %v1771 = vshrl.u32 1326507024, %v1756
      %v1772 = vor.u32 %v1770, %v1771
      %vm1773 = vcmp.lt.s32.totalorder %v1754, 1
      %vm1774 = vcmp.lt.s32.totalorder %v1754, 2
      %vm1775 = vcmp.lt.s32.totalorder %v1754, 3
      %vm1776 = vcmp.lt.s32.totalorder %v1754, 4
      %v1777 = vsel %vm1773, %v1757, %v1760
      %v1778 = vsel %vm1776, %v1766, 2102212464
      %v1779 = vsel %vm1775, %v1763, %v1778
      %v1780 = vsel %vm1774, %v1777, %v1779
      %v1781 = vsel %vm1773, %v1760, %v1763
      %v1782 = vsel %vm1776, %v1769, 920167782
      %v1783 = vsel %vm1775, %v1766, %v1782
      %v1784 = vsel %vm1774, %v1781, %v1783
      %v1785 = vsel %vm1773, %v1763, %v1766
      %v1786 = vsel %vm1776, %v1772, 1326507024
      %v1787 = vsel %vm1775, %v1769, %v1786
      %v1788 = vsel %vm1774, %v1785, %v1787
      %v1789 = vshll.u32 %v1749, 8
      %v1790 = vand.u32 %v1789, 65535
      %v1791 = vshrl.u32 %v1789, 16
      %v1792 = vand.u32 %v1788, 65535
      %v1793 = vshrl.u32 %v1788, 16
      %v1794 = vmul.u32 %v1790, %v1792
      %v1795 = vmul.u32 %v1790, %v1793
      %v1796 = vmul.u32 %v1791, %v1792
      %v1797 = vmul.u32 %v1791, %v1793
      %v1798 = vshll.u32 %v1795, 16
      %v1799 = vshrl.u32 %v1795, 16
      %v1800 = vshll.u32 %v1796, 16
      %v1801 = vshrl.u32 %v1796, 16
      %vm1802 = vc.u32 %v1794, %v1798
      %v1803 = vsel %vm1802, 1, 0
      %v1804 = vadd.s32 %v1794, %v1798
      %v1805 = vadd.s32 %v1797, %v1803
      %vm1806 = vc.u32 %v1804, %v1800
      %v1807 = vsel %vm1806, 1, 0
      %v1808 = vadd.s32 %v1804, %v1800
      %v1809 = vadd.s32 %v1805, %v1807
      %v1810 = vadd.s32 %v1809, %v1799
      %v1811 = vadd.s32 %v1810, %v1801
      %v1812 = vand.u32 %v1789, 65535
      %v1813 = vshrl.u32 %v1789, 16
      %v1814 = vand.u32 %v1784, 65535
      %v1815 = vshrl.u32 %v1784, 16
      %v1816 = vmul.u32 %v1812, %v1814
      %v1817 = vmul.u32 %v1812, %v1815
      %v1818 = vmul.u32 %v1813, %v1814
      %v1819 = vmul.u32 %v1813, %v1815
      %v1820 = vshll.u32 %v1817, 16
      %v1821 = vshrl.u32 %v1817, 16
      %v1822 = vshll.u32 %v1818, 16
      %v1823 = vshrl.u32 %v1818, 16
      %vm1824 = vc.u32 %v1816, %v1820
      %v1825 = vsel %vm1824, 1, 0
      %v1826 = vadd.s32 %v1816, %v1820
      %v1827 = vadd.s32 %v1819, %v1825
      %vm1828 = vc.u32 %v1826, %v1822
      %v1829 = vsel %vm1828, 1, 0
      %v1830 = vadd.s32 %v1826, %v1822
      %v1831 = vadd.s32 %v1827, %v1829
      %v1832 = vadd.s32 %v1831, %v1821
      %v1833 = vadd.s32 %v1832, %v1823
      %v1834 = vmul.u32 %v1789, %v1780
      %v1835 = vadd.s32 %v1811, %v1830
      %vm1836 = vc.u32 %v1811, %v1830
      %v1837 = vadd.s32 %v1833, 1
      %v1838 = vsel %vm1836, %v1837, %v1833
      %v1839 = vadd.s32 %v1834, %v1838
      %v1840 = vadd.s32 %v1839, 536870912
      %v1841 = vshrl.u32 %v1840, 30
      %v1842 = vshll.u32 %v1841, 30
      %v1843 = vsub.s32 %v1839, %v1842
      %vm1844 = vcmp.lt.s32.totalorder %v1843, 0
      %v1845 = vsub.s32 0, %v1843
      %v1846 = vsel %vm1844, %v1845, %v1843
      %v1847 = vclz %v1846
      %v1848 = vsub.s32 %v1847, 2
      %vm1849 = vcmp.gt.s32.totalorder 0, %v1848
      %v1850 = vsel %vm1849, 0, %v1848
      %v1851 = vsub.s32 32, %v1850
      %v1852 = vshll.u32 %v1843, %v1850
      %v1853 = vshrl.u32 %v1835, %v1851
      %v1854 = vor.u32 %v1852, %v1853
      %v1855 = vsub.s32 4294967266, %v1850
      %v1856 = vadd.s32 %v1855, 127
      %v1857 = vshll.u32 %v1856, 23
      %v1858 = vor.u32 4788187, %v1857
      %v1859 = vand.u32 2147483647, %v1858
      %v1861 = vcvt.s32.f32 %v1854
      %v1862 = vmul.f32 %v1861, %v1859
      %v1863 = vxor.u32 %v1862, 2147483648
      %v1864 = vsel %vm1743, %v1863, %v1862
      %v1865 = vsub.s32 4, %v1841
      %v1866 = vsel %vm1743, %v1865, %v1841
      %v1867 = vsel %vm1742, %v1580, %v1864
      %v1868 = vsel %vm1742, 0, %v1866
      %v1869 = vmul.f32 %v1867, %v1867
      %v1870 = vmul.f32 %v1869, -0.001358992
      %v1871 = vadd.f32 %v1870, 0.041655596
      %v1872 = vmul.f32 %v1869, %v1871
      %v1873 = vadd.f32 %v1872, -0.4999988
      %v1874 = vmul.f32 %v1869, %v1873
      %v1875 = vadd.f32 1.0, %v1874
      %v1876 = vmul.f32 %v1867, %v1867
      %v1877 = vmul.f32 %v1876, -0.00019511016
      %v1878 = vadd.f32 %v1877, 0.008332121
      %v1879 = vmul.f32 %v1876, %v1878
      %v1880 = vadd.f32 %v1879, -0.16666654
      %v1881 = vmul.f32 %v1876, %v1880
      %v1882 = vadd.f32 %v1881, 1.0
      %v1883 = vmul.f32 %v1882, %v1867
      %vm1884 = vweird.f32 %v1580
      %v1885 = vand.u32 %v1868, 3
      %vm1886 = vcmp.lt.s32.totalorder %v1885, 2
      %vm1887 = vcmp.eq.s32.totalorder %v1885, 0
      %v1888 = vxor.u32 %v1883, 2147483648
      %v1889 = vsel %vm1887, %v1875, %v1888
      %vm1890 = vcmp.eq.s32.totalorder %v1885, 2
      %v1891 = vxor.u32 %v1875, 2147483648
      %v1892 = vsel %vm1890, %v1891, %v1883
      %v1893 = vsel %vm1886, %v1889, %v1892
      %v1894 = vsel %vm1884, nan, %v1893
      %v1895 = vand.u32 2147483647, %v1581
      %vm1896 = vcmp.le.f32.partialorder %v1895, 0.7853982
      %vm1897 = vcmp.lt.s32.totalorder %v1581, 0
      %v1898 = vand.u32 %v1581, 2139095040
      %v1899 = vshrl.u32 %v1898, 23
      %v1900 = vsub.s32 %v1899, 127
      %v1901 = vand.u32 2147483647, %v1581
      %v1902 = vand.u32 %v1901, 8388607
      %v1903 = vor.u32 %v1902, 8388608
      %v1904 = vsub.s32 0, %v1903
      %v1905 = vadd.s32 %v1900, 1
      %vm1906 = vcmp.gt.s32.totalorder %v1905, 0
      %v1907 = vsel %vm1906, %v1905, 0
      %v1908 = vshrl.u32 %v1907, 5
      %v1909 = vand.u32 %v1907, 31
      %v1910 = vsub.s32 32, %v1909
      %v1911 = vshrl.u32 683565275, %v1910
      %v1912 = vshll.u32 683565275, %v1909
      %v1913 = vshrl.u32 2475754826, %v1910
      %v1914 = vor.u32 %v1912, %v1913
      %v1915 = vshll.u32 2475754826, %v1909
      %v1916 = vshrl.u32 2131351028, %v1910
      %v1917 = vor.u32 %v1915, %v1916
      %v1918 = vshll.u32 2131351028, %v1909
      %v1919 = vshrl.u32 2102212464, %v1910
      %v1920 = vor.u32 %v1918, %v1919
      %v1921 = vshll.u32 2102212464, %v1909
      %v1922 = vshrl.u32 920167782, %v1910
      %v1923 = vor.u32 %v1921, %v1922
      %v1924 = vshll.u32 920167782, %v1909
      %v1925 = vshrl.u32 1326507024, %v1910
      %v1926 = vor.u32 %v1924, %v1925
      %vm1927 = vcmp.lt.s32.totalorder %v1908, 1
      %vm1928 = vcmp.lt.s32.totalorder %v1908, 2
      %vm1929 = vcmp.lt.s32.totalorder %v1908, 3
      %vm1930 = vcmp.lt.s32.totalorder %v1908, 4
      %v1931 = vsel %vm1927, %v1911, %v1914
      %v1932 = vsel %vm1930, %v1920, 2102212464
      %v1933 = vsel %vm1929, %v1917, %v1932
      %v1934 = vsel %vm1928, %v1931, %v1933
      %v1935 = vsel %vm1927, %v1914, %v1917
      %v1936 = vsel %vm1930, %v1923, 920167782
      %v1937 = vsel %vm1929, %v1920, %v1936
      %v1938 = vsel %vm1928, %v1935, %v1937
      %v1939 = vsel %vm1927, %v1917, %v1920
      %v1940 = vsel %vm1930, %v1926, 1326507024
      %v1941 = vsel %vm1929, %v1923, %v1940
      %v1942 = vsel %vm1928, %v1939, %v1941
      %v1943 = vshll.u32 %v1903, 8
      %v1944 = vand.u32 %v1943, 65535
      %v1945 = vshrl.u32 %v1943, 16
      %v1946 = vand.u32 %v1942, 65535
      %v1947 = vshrl.u32 %v1942, 16
      %v1948 = vmul.u32 %v1944, %v1946
      %v1949 = vmul.u32 %v1944, %v1947
      %v1950 = vmul.u32 %v1945, %v1946
      %v1951 = vmul.u32 %v1945, %v1947
      %v1952 = vshll.u32 %v1949, 16
      %v1953 = vshrl.u32 %v1949, 16
      %v1954 = vshll.u32 %v1950, 16
      %v1955 = vshrl.u32 %v1950, 16
      %vm1956 = vc.u32 %v1948, %v1952
      %v1957 = vsel %vm1956, 1, 0
      %v1958 = vadd.s32 %v1948, %v1952
      %v1959 = vadd.s32 %v1951, %v1957
      %vm1960 = vc.u32 %v1958, %v1954
      %v1961 = vsel %vm1960, 1, 0
      %v1962 = vadd.s32 %v1958, %v1954
      %v1963 = vadd.s32 %v1959, %v1961
      %v1964 = vadd.s32 %v1963, %v1953
      %v1965 = vadd.s32 %v1964, %v1955
      %v1966 = vand.u32 %v1943, 65535
      %v1967 = vshrl.u32 %v1943, 16
      %v1968 = vand.u32 %v1938, 65535
      %v1969 = vshrl.u32 %v1938, 16
      %v1970 = vmul.u32 %v1966, %v1968
      %v1971 = vmul.u32 %v1966, %v1969
      %v1972 = vmul.u32 %v1967, %v1968
      %v1973 = vmul.u32 %v1967, %v1969
      %v1974 = vshll.u32 %v1971, 16
      %v1975 = vshrl.u32 %v1971, 16
      %v1976 = vshll.u32 %v1972, 16
      %v1977 = vshrl.u32 %v1972, 16
      %vm1978 = vc.u32 %v1970, %v1974
      %v1979 = vsel %vm1978, 1, 0
      %v1980 = vadd.s32 %v1970, %v1974
      %v1981 = vadd.s32 %v1973, %v1979
      %vm1982 = vc.u32 %v1980, %v1976
      %v1983 = vsel %vm1982, 1, 0
      %v1984 = vadd.s32 %v1980, %v1976
      %v1985 = vadd.s32 %v1981, %v1983
      %v1986 = vadd.s32 %v1985, %v1975
      %v1987 = vadd.s32 %v1986, %v1977
      %v1988 = vmul.u32 %v1943, %v1934
      %v1989 = vadd.s32 %v1965, %v1984
      %vm1990 = vc.u32 %v1965, %v1984
      %v1991 = vadd.s32 %v1987, 1
      %v1992 = vsel %vm1990, %v1991, %v1987
      %v1993 = vadd.s32 %v1988, %v1992
      %v1994 = vadd.s32 %v1993, 536870912
      %v1995 = vshrl.u32 %v1994, 30
      %v1996 = vshll.u32 %v1995, 30
      %v1997 = vsub.s32 %v1993, %v1996
      %vm1998 = vcmp.lt.s32.totalorder %v1997, 0
      %v1999 = vsub.s32 0, %v1997
      %v2000 = vsel %vm1998, %v1999, %v1997
      %v2001 = vclz %v2000
      %v2002 = vsub.s32 %v2001, 2
      %vm2003 = vcmp.gt.s32.totalorder 0, %v2002
      %v2004 = vsel %vm2003, 0, %v2002
      %v2005 = vsub.s32 32, %v2004
      %v2006 = vshll.u32 %v1997, %v2004
      %v2007 = vshrl.u32 %v1989, %v2005
      %v2008 = vor.u32 %v2006, %v2007
      %v2009 = vsub.s32 4294967266, %v2004
      %v2010 = vadd.s32 %v2009, 127
      %v2011 = vshll.u32 %v2010, 23
      %v2012 = vor.u32 4788187, %v2011
      %v2013 = vand.u32 2147483647, %v2012
      %v2015 = vcvt.s32.f32 %v2008
      %v2016 = vmul.f32 %v2015, %v2013
      %v2017 = vxor.u32 %v2016, 2147483648
      %v2018 = vsel %vm1897, %v2017, %v2016
      %v2019 = vsub.s32 4, %v1995
      %v2020 = vsel %vm1897, %v2019, %v1995
      %v2021 = vsel %vm1896, %v1581, %v2018
      %v2022 = vsel %vm1896, 0, %v2020
      %v2023 = vmul.f32 %v2021, %v2021
      %v2024 = vmul.f32 %v2023, -0.001358992
      %v2025 = vadd.f32 %v2024, 0.041655596
      %v2026 = vmul.f32 %v2023, %v2025
      %v2027 = vadd.f32 %v2026, -0.4999988
      %v2028 = vmul.f32 %v2023, %v2027
      %v2029 = vadd.f32 1.0, %v2028
      %v2030 = vmul.f32 %v2021, %v2021
      %v2031 = vmul.f32 %v2030, -0.00019511016
      %v2032 = vadd.f32 %v2031, 0.008332121
      %v2033 = vmul.f32 %v2030, %v2032
      %v2034 = vadd.f32 %v2033, -0.16666654
      %v2035 = vmul.f32 %v2030, %v2034
      %v2036 = vadd.f32 %v2035, 1.0
      %v2037 = vmul.f32 %v2036, %v2021
      %vm2038 = vweird.f32 %v1581
      %v2039 = vand.u32 %v2022, 3
      %vm2040 = vcmp.lt.s32.totalorder %v2039, 2
      %vm2041 = vcmp.eq.s32.totalorder %v2039, 0
      %v2042 = vxor.u32 %v2037, 2147483648
      %v2043 = vsel %vm2041, %v2029, %v2042
      %vm2044 = vcmp.eq.s32.totalorder %v2039, 2
      %v2045 = vxor.u32 %v2029, 2147483648
      %v2046 = vsel %vm2044, %v2045, %v2037
      %v2047 = vsel %vm2040, %v2043, %v2046
      %v2048 = vsel %vm2038, nan, %v2047
      %v2049 = vand.u32 2147483647, %v1582
      %vm2050 = vcmp.le.f32.partialorder %v2049, 0.7853982
      %vm2051 = vcmp.lt.s32.totalorder %v1582, 0
      %v2052 = vand.u32 %v1582, 2139095040
      %v2053 = vshrl.u32 %v2052, 23
      %v2054 = vsub.s32 %v2053, 127
      %v2055 = vand.u32 2147483647, %v1582
      %v2056 = vand.u32 %v2055, 8388607
      %v2057 = vor.u32 %v2056, 8388608
      %v2058 = vsub.s32 0, %v2057
      %v2059 = vadd.s32 %v2054, 1
      %vm2060 = vcmp.gt.s32.totalorder %v2059, 0
      %v2061 = vsel %vm2060, %v2059, 0
      %v2062 = vshrl.u32 %v2061, 5
      %v2063 = vand.u32 %v2061, 31
      %v2064 = vsub.s32 32, %v2063
      %v2065 = vshrl.u32 683565275, %v2064
      %v2066 = vshll.u32 683565275, %v2063
      %v2067 = vshrl.u32 2475754826, %v2064
      %v2068 = vor.u32 %v2066, %v2067
      %v2069 = vshll.u32 2475754826, %v2063
      %v2070 = vshrl.u32 2131351028, %v2064
      %v2071 = vor.u32 %v2069, %v2070
      %v2072 = vshll.u32 2131351028, %v2063
      %v2073 = vshrl.u32 2102212464, %v2064
      %v2074 = vor.u32 %v2072, %v2073
      %v2075 = vshll.u32 2102212464, %v2063
      %v2076 = vshrl.u32 920167782, %v2064
      %v2077 = vor.u32 %v2075, %v2076
      %v2078 = vshll.u32 920167782, %v2063
      %v2079 = vshrl.u32 1326507024, %v2064
      %v2080 = vor.u32 %v2078, %v2079
      %vm2081 = vcmp.lt.s32.totalorder %v2062, 1
      %vm2082 = vcmp.lt.s32.totalorder %v2062, 2
      %vm2083 = vcmp.lt.s32.totalorder %v2062, 3
      %vm2084 = vcmp.lt.s32.totalorder %v2062, 4
      %v2085 = vsel %vm2081, %v2065, %v2068
      %v2086 = vsel %vm2084, %v2074, 2102212464
      %v2087 = vsel %vm2083, %v2071, %v2086
      %v2088 = vsel %vm2082, %v2085, %v2087
      %v2089 = vsel %vm2081, %v2068, %v2071
      %v2090 = vsel %vm2084, %v2077, 920167782
      %v2091 = vsel %vm2083, %v2074, %v2090
      %v2092 = vsel %vm2082, %v2089, %v2091
      %v2093 = vsel %vm2081, %v2071, %v2074
      %v2094 = vsel %vm2084, %v2080, 1326507024
      %v2095 = vsel %vm2083, %v2077, %v2094
      %v2096 = vsel %vm2082, %v2093, %v2095
      %v2097 = vshll.u32 %v2057, 8
      %v2098 = vand.u32 %v2097, 65535
      %v2099 = vshrl.u32 %v2097, 16
      %v2100 = vand.u32 %v2096, 65535
      %v2101 = vshrl.u32 %v2096, 16
      %v2102 = vmul.u32 %v2098, %v2100
      %v2103 = vmul.u32 %v2098, %v2101
      %v2104 = vmul.u32 %v2099, %v2100
      %v2105 = vmul.u32 %v2099, %v2101
      %v2106 = vshll.u32 %v2103, 16
      %v2107 = vshrl.u32 %v2103, 16
      %v2108 = vshll.u32 %v2104, 16
      %v2109 = vshrl.u32 %v2104, 16
      %vm2110 = vc.u32 %v2102, %v2106
      %v2111 = vsel %vm2110, 1, 0
      %v2112 = vadd.s32 %v2102, %v2106
      %v2113 = vadd.s32 %v2105, %v2111
      %vm2114 = vc.u32 %v2112, %v2108
      %v2115 = vsel %vm2114, 1, 0
      %v2116 = vadd.s32 %v2112, %v2108
      %v2117 = vadd.s32 %v2113, %v2115
      %v2118 = vadd.s32 %v2117, %v2107
      %v2119 = vadd.s32 %v2118, %v2109
      %v2120 = vand.u32 %v2097, 65535
      %v2121 = vshrl.u32 %v2097, 16
      %v2122 = vand.u32 %v2092, 65535
      %v2123 = vshrl.u32 %v2092, 16
      %v2124 = vmul.u32 %v2120, %v2122
      %v2125 = vmul.u32 %v2120, %v2123
      %v2126 = vmul.u32 %v2121, %v2122
      %v2127 = vmul.u32 %v2121, %v2123
      %v2128 = vshll.u32 %v2125, 16
      %v2129 = vshrl.u32 %v2125, 16
      %v2130 = vshll.u32 %v2126, 16
      %v2131 = vshrl.u32 %v2126, 16
      %vm2132 = vc.u32 %v2124, %v2128
      %v2133 = vsel %vm2132, 1, 0
      %v2134 = vadd.s32 %v2124, %v2128
      %v2135 = vadd.s32 %v2127, %v2133
      %vm2136 = vc.u32 %v2134, %v2130
      %v2137 = vsel %vm2136, 1, 0
      %v2138 = vadd.s32 %v2134, %v2130
      %v2139 = vadd.s32 %v2135, %v2137
      %v2140 = vadd.s32 %v2139, %v2129
      %v2141 = vadd.s32 %v2140, %v2131
      %v2142 = vmul.u32 %v2097, %v2088
      %v2143 = vadd.s32 %v2119, %v2138
      %vm2144 = vc.u32 %v2119, %v2138
      %v2145 = vadd.s32 %v2141, 1
      %v2146 = vsel %vm2144, %v2145, %v2141
      %v2147 = vadd.s32 %v2142, %v2146
      %v2148 = vadd.s32 %v2147, 536870912
      %v2149 = vshrl.u32 %v2148, 30
      %v2150 = vshll.u32 %v2149, 30
      %v2151 = vsub.s32 %v2147, %v2150
      %vm2152 = vcmp.lt.s32.totalorder %v2151, 0
      %v2153 = vsub.s32 0, %v2151
      %v2154 = vsel %vm2152, %v2153, %v2151
      %v2155 = vclz %v2154
      %v2156 = vsub.s32 %v2155, 2
      %vm2157 = vcmp.gt.s32.totalorder 0, %v2156
      %v2158 = vsel %vm2157, 0, %v2156
      %v2159 = vsub.s32 32, %v2158
      %v2160 = vshll.u32 %v2151, %v2158
      %v2161 = vshrl.u32 %v2143, %v2159
      %v2162 = vor.u32 %v2160, %v2161
      %v2163 = vsub.s32 4294967266, %v2158
      %v2164 = vadd.s32 %v2163, 127
      %v2165 = vshll.u32 %v2164, 23
      %v2166 = vor.u32 4788187, %v2165
      %v2167 = vand.u32 2147483647, %v2166
      %v2169 = vcvt.s32.f32 %v2162
      %v2170 = vmul.f32 %v2169, %v2167
      %v2171 = vxor.u32 %v2170, 2147483648
      %v2172 = vsel %vm2051, %v2171, %v2170
      %v2173 = vsub.s32 4, %v2149
      %v2174 = vsel %vm2051, %v2173, %v2149
      %v2175 = vsel %vm2050, %v1582, %v2172
      %v2176 = vsel %vm2050, 0, %v2174
      %v2177 = vmul.f32 %v2175, %v2175
      %v2178 = vmul.f32 %v2177, -0.001358992
      %v2179 = vadd.f32 %v2178, 0.041655596
      %v2180 = vmul.f32 %v2177, %v2179
      %v2181 = vadd.f32 %v2180, -0.4999988
      %v2182 = vmul.f32 %v2177, %v2181
      %v2183 = vadd.f32 1.0, %v2182
      %v2184 = vmul.f32 %v2175, %v2175
      %v2185 = vmul.f32 %v2184, -0.00019511016
      %v2186 = vadd.f32 %v2185, 0.008332121
      %v2187 = vmul.f32 %v2184, %v2186
      %v2188 = vadd.f32 %v2187, -0.16666654
      %v2189 = vmul.f32 %v2184, %v2188
      %v2190 = vadd.f32 %v2189, 1.0
      %v2191 = vmul.f32 %v2190, %v2175
      %vm2192 = vweird.f32 %v1582
      %v2193 = vand.u32 %v2176, 3
      %vm2194 = vcmp.lt.s32.totalorder %v2193, 2
      %vm2195 = vcmp.eq.s32.totalorder %v2193, 0
      %v2196 = vxor.u32 %v2191, 2147483648
      %v2197 = vsel %vm2195, %v2183, %v2196
      %vm2198 = vcmp.eq.s32.totalorder %v2193, 2
      %v2199 = vxor.u32 %v2183, 2147483648
      %v2200 = vsel %vm2198, %v2199, %v2191
      %v2201 = vsel %vm2194, %v2197, %v2200
      %v2202 = vsel %vm2192, nan, %v2201
      %v2203 = vand.u32 2147483647, %v1583
      %vm2204 = vcmp.le.f32.partialorder %v2203, 0.7853982
      %vm2205 = vcmp.lt.s32.totalorder %v1583, 0
      %v2206 = vand.u32 %v1583, 2139095040
      %v2207 = vshrl.u32 %v2206, 23
      %v2208 = vsub.s32 %v2207, 127
      %v2209 = vand.u32 2147483647, %v1583
      %v2210 = vand.u32 %v2209, 8388607
      %v2211 = vor.u32 %v2210, 8388608
      %v2212 = vsub.s32 0, %v2211
      %v2213 = vadd.s32 %v2208, 1
      %vm2214 = vcmp.gt.s32.totalorder %v2213, 0
      %v2215 = vsel %vm2214, %v2213, 0
      %v2216 = vshrl.u32 %v2215, 5
      %v2217 = vand.u32 %v2215, 31
      %v2218 = vsub.s32 32, %v2217
      %v2219 = vshrl.u32 683565275, %v2218
      %v2220 = vshll.u32 683565275, %v2217
      %v2221 = vshrl.u32 2475754826, %v2218
      %v2222 = vor.u32 %v2220, %v2221
      %v2223 = vshll.u32 2475754826, %v2217
      %v2224 = vshrl.u32 2131351028, %v2218
      %v2225 = vor.u32 %v2223, %v2224
      %v2226 = vshll.u32 2131351028, %v2217
      %v2227 = vshrl.u32 2102212464, %v2218
      %v2228 = vor.u32 %v2226, %v2227
      %v2229 = vshll.u32 2102212464, %v2217
      %v2230 = vshrl.u32 920167782, %v2218
      %v2231 = vor.u32 %v2229, %v2230
      %v2232 = vshll.u32 920167782, %v2217
      %v2233 = vshrl.u32 1326507024, %v2218
      %v2234 = vor.u32 %v2232, %v2233
      %vm2235 = vcmp.lt.s32.totalorder %v2216, 1
      %vm2236 = vcmp.lt.s32.totalorder %v2216, 2
      %vm2237 = vcmp.lt.s32.totalorder %v2216, 3
      %vm2238 = vcmp.lt.s32.totalorder %v2216, 4
      %v2239 = vsel %vm2235, %v2219, %v2222
      %v2240 = vsel %vm2238, %v2228, 2102212464
      %v2241 = vsel %vm2237, %v2225, %v2240
      %v2242 = vsel %vm2236, %v2239, %v2241
      %v2243 = vsel %vm2235, %v2222, %v2225
      %v2244 = vsel %vm2238, %v2231, 920167782
      %v2245 = vsel %vm2237, %v2228, %v2244
      %v2246 = vsel %vm2236, %v2243, %v2245
      %v2247 = vsel %vm2235, %v2225, %v2228
      %v2248 = vsel %vm2238, %v2234, 1326507024
      %v2249 = vsel %vm2237, %v2231, %v2248
      %v2250 = vsel %vm2236, %v2247, %v2249
      %v2251 = vshll.u32 %v2211, 8
      %v2252 = vand.u32 %v2251, 65535
      %v2253 = vshrl.u32 %v2251, 16
      %v2254 = vand.u32 %v2250, 65535
      %v2255 = vshrl.u32 %v2250, 16
      %v2256 = vmul.u32 %v2252, %v2254
      %v2257 = vmul.u32 %v2252, %v2255
      %v2258 = vmul.u32 %v2253, %v2254
      %v2259 = vmul.u32 %v2253, %v2255
      %v2260 = vshll.u32 %v2257, 16
      %v2261 = vshrl.u32 %v2257, 16
      %v2262 = vshll.u32 %v2258, 16
      %v2263 = vshrl.u32 %v2258, 16
      %vm2264 = vc.u32 %v2256, %v2260
      %v2265 = vsel %vm2264, 1, 0
      %v2266 = vadd.s32 %v2256, %v2260
      %v2267 = vadd.s32 %v2259, %v2265
      %vm2268 = vc.u32 %v2266, %v2262
      %v2269 = vsel %vm2268, 1, 0
      %v2270 = vadd.s32 %v2266, %v2262
      %v2271 = vadd.s32 %v2267, %v2269
      %v2272 = vadd.s32 %v2271, %v2261
      %v2273 = vadd.s32 %v2272, %v2263
      %v2274 = vand.u32 %v2251, 65535
      %v2275 = vshrl.u32 %v2251, 16
      %v2276 = vand.u32 %v2246, 65535
      %v2277 = vshrl.u32 %v2246, 16
      %v2278 = vmul.u32 %v2274, %v2276
      %v2279 = vmul.u32 %v2274, %v2277
      %v2280 = vmul.u32 %v2275, %v2276
      %v2281 = vmul.u32 %v2275, %v2277
      %v2282 = vshll.u32 %v2279, 16
      %v2283 = vshrl.u32 %v2279, 16
      %v2284 = vshll.u32 %v2280, 16
      %v2285 = vshrl.u32 %v2280, 16
      %vm2286 = vc.u32 %v2278, %v2282
      %v2287 = vsel %vm2286, 1, 0
      %v2288 = vadd.s32 %v2278, %v2282
      %v2289 = vadd.s32 %v2281, %v2287
      %vm2290 = vc.u32 %v2288, %v2284
      %v2291 = vsel %vm2290, 1, 0
      %v2292 = vadd.s32 %v2288, %v2284
      %v2293 = vadd.s32 %v2289, %v2291
      %v2294 = vadd.s32 %v2293, %v2283
      %v2295 = vadd.s32 %v2294, %v2285
      %v2296 = vmul.u32 %v2251, %v2242
      %v2297 = vadd.s32 %v2273, %v2292
      %vm2298 = vc.u32 %v2273, %v2292
      %v2299 = vadd.s32 %v2295, 1
      %v2300 = vsel %vm2298, %v2299, %v2295
      %v2301 = vadd.s32 %v2296, %v2300
      %v2302 = vadd.s32 %v2301, 536870912
      %v2303 = vshrl.u32 %v2302, 30
      %v2304 = vshll.u32 %v2303, 30
      %v2305 = vsub.s32 %v2301, %v2304
      %vm2306 = vcmp.lt.s32.totalorder %v2305, 0
      %v2307 = vsub.s32 0, %v2305
      %v2308 = vsel %vm2306, %v2307, %v2305
      %v2309 = vclz %v2308
      %v2310 = vsub.s32 %v2309, 2
      %vm2311 = vcmp.gt.s32.totalorder 0, %v2310
      %v2312 = vsel %vm2311, 0, %v2310
      %v2313 = vsub.s32 32, %v2312
      %v2314 = vshll.u32 %v2305, %v2312
      %v2315 = vshrl.u32 %v2297, %v2313
      %v2316 = vor.u32 %v2314, %v2315
      %v2317 = vsub.s32 4294967266, %v2312
      %v2318 = vadd.s32 %v2317, 127
      %v2319 = vshll.u32 %v2318, 23
      %v2320 = vor.u32 4788187, %v2319
      %v2321 = vand.u32 2147483647, %v2320
      %v2323 = vcvt.s32.f32 %v2316
      %v2324 = vmul.f32 %v2323, %v2321
      %v2325 = vxor.u32 %v2324, 2147483648
      %v2326 = vsel %vm2205, %v2325, %v2324
      %v2327 = vsub.s32 4, %v2303
      %v2328 = vsel %vm2205, %v2327, %v2303
      %v2329 = vsel %vm2204, %v1583, %v2326
      %v2330 = vsel %vm2204, 0, %v2328
      %v2331 = vmul.f32 %v2329, %v2329
      %v2332 = vmul.f32 %v2331, -0.001358992
      %v2333 = vadd.f32 %v2332, 0.041655596
      %v2334 = vmul.f32 %v2331, %v2333
      %v2335 = vadd.f32 %v2334, -0.4999988
      %v2336 = vmul.f32 %v2331, %v2335
      %v2337 = vadd.f32 1.0, %v2336
      %v2338 = vmul.f32 %v2329, %v2329
      %v2339 = vmul.f32 %v2338, -0.00019511016
      %v2340 = vadd.f32 %v2339, 0.008332121
      %v2341 = vmul.f32 %v2338, %v2340
      %v2342 = vadd.f32 %v2341, -0.16666654
      %v2343 = vmul.f32 %v2338, %v2342
      %v2344 = vadd.f32 %v2343, 1.0
      %v2345 = vmul.f32 %v2344, %v2329
      %vm2346 = vweird.f32 %v1583
      %v2347 = vand.u32 %v2330, 3
      %vm2348 = vcmp.lt.s32.totalorder %v2347, 2
      %vm2349 = vcmp.eq.s32.totalorder %v2347, 0
      %v2350 = vxor.u32 %v2345, 2147483648
      %v2351 = vsel %vm2349, %v2337, %v2350
      %vm2352 = vcmp.eq.s32.totalorder %v2347, 2
      %v2353 = vxor.u32 %v2337, 2147483648
      %v2354 = vsel %vm2352, %v2353, %v2345
      %v2355 = vsel %vm2348, %v2351, %v2354
      %v2356 = vsel %vm2346, nan, %v2355
      %v2357 = vand.u32 2147483647, %v1584
      %vm2358 = vcmp.le.f32.partialorder %v2357, 0.7853982
      %vm2359 = vcmp.lt.s32.totalorder %v1584, 0
      %v2360 = vand.u32 %v1584, 2139095040
      %v2361 = vshrl.u32 %v2360, 23
      %v2362 = vsub.s32 %v2361, 127
      %v2363 = vand.u32 2147483647, %v1584
      %v2364 = vand.u32 %v2363, 8388607
      %v2365 = vor.u32 %v2364, 8388608
      %v2366 = vsub.s32 0, %v2365
      %v2367 = vadd.s32 %v2362, 1
      %vm2368 = vcmp.gt.s32.totalorder %v2367, 0
      %v2369 = vsel %vm2368, %v2367, 0
      %v2370 = vshrl.u32 %v2369, 5
      %v2371 = vand.u32 %v2369, 31
      %v2372 = vsub.s32 32, %v2371
      %v2373 = vshrl.u32 683565275, %v2372
      %v2374 = vshll.u32 683565275, %v2371
      %v2375 = vshrl.u32 2475754826, %v2372
      %v2376 = vor.u32 %v2374, %v2375
      %v2377 = vshll.u32 2475754826, %v2371
      %v2378 = vshrl.u32 2131351028, %v2372
      %v2379 = vor.u32 %v2377, %v2378
      %v2380 = vshll.u32 2131351028, %v2371
      %v2381 = vshrl.u32 2102212464, %v2372
      %v2382 = vor.u32 %v2380, %v2381
      %v2383 = vshll.u32 2102212464, %v2371
      %v2384 = vshrl.u32 920167782, %v2372
      %v2385 = vor.u32 %v2383, %v2384
      %v2386 = vshll.u32 920167782, %v2371
      %v2387 = vshrl.u32 1326507024, %v2372
      %v2388 = vor.u32 %v2386, %v2387
      %vm2389 = vcmp.lt.s32.totalorder %v2370, 1
      %vm2390 = vcmp.lt.s32.totalorder %v2370, 2
      %vm2391 = vcmp.lt.s32.totalorder %v2370, 3
      %vm2392 = vcmp.lt.s32.totalorder %v2370, 4
      %v2393 = vsel %vm2389, %v2373, %v2376
      %v2394 = vsel %vm2392, %v2382, 2102212464
      %v2395 = vsel %vm2391, %v2379, %v2394
      %v2396 = vsel %vm2390, %v2393, %v2395
      %v2397 = vsel %vm2389, %v2376, %v2379
      %v2398 = vsel %vm2392, %v2385, 920167782
      %v2399 = vsel %vm2391, %v2382, %v2398
      %v2400 = vsel %vm2390, %v2397, %v2399
      %v2401 = vsel %vm2389, %v2379, %v2382
      %v2402 = vsel %vm2392, %v2388, 1326507024
      %v2403 = vsel %vm2391, %v2385, %v2402
      %v2404 = vsel %vm2390, %v2401, %v2403
      %v2405 = vshll.u32 %v2365, 8
      %v2406 = vand.u32 %v2405, 65535
      %v2407 = vshrl.u32 %v2405, 16
      %v2408 = vand.u32 %v2404, 65535
      %v2409 = vshrl.u32 %v2404, 16
      %v2410 = vmul.u32 %v2406, %v2408
      %v2411 = vmul.u32 %v2406, %v2409
      %v2412 = vmul.u32 %v2407, %v2408
      %v2413 = vmul.u32 %v2407, %v2409
      %v2414 = vshll.u32 %v2411, 16
      %v2415 = vshrl.u32 %v2411, 16
      %v2416 = vshll.u32 %v2412, 16
      %v2417 = vshrl.u32 %v2412, 16
      %vm2418 = vc.u32 %v2410, %v2414
      %v2419 = vsel %vm2418, 1, 0
      %v2420 = vadd.s32 %v2410, %v2414
      %v2421 = vadd.s32 %v2413, %v2419
      %vm2422 = vc.u32 %v2420, %v2416
      %v2423 = vsel %vm2422, 1, 0
      %v2424 = vadd.s32 %v2420, %v2416
      %v2425 = vadd.s32 %v2421, %v2423
      %v2426 = vadd.s32 %v2425, %v2415
      %v2427 = vadd.s32 %v2426, %v2417
      %v2428 = vand.u32 %v2405, 65535
      %v2429 = vshrl.u32 %v2405, 16
      %v2430 = vand.u32 %v2400, 65535
      %v2431 = vshrl.u32 %v2400, 16
      %v2432 = vmul.u32 %v2428, %v2430
      %v2433 = vmul.u32 %v2428, %v2431
      %v2434 = vmul.u32 %v2429, %v2430
      %v2435 = vmul.u32 %v2429, %v2431
      %v2436 = vshll.u32 %v2433, 16
      %v2437 = vshrl.u32 %v2433, 16
      %v2438 = vshll.u32 %v2434, 16
      %v2439 = vshrl.u32 %v2434, 16
      %vm2440 = vc.u32 %v2432, %v2436
      %v2441 = vsel %vm2440, 1, 0
      %v2442 = vadd.s32 %v2432, %v2436
      %v2443 = vadd.s32 %v2435, %v2441
      %vm2444 = vc.u32 %v2442, %v2438
      %v2445 = vsel %vm2444, 1, 0
      %v2446 = vadd.s32 %v2442, %v2438
      %v2447 = vadd.s32 %v2443, %v2445
      %v2448 = vadd.s32 %v2447, %v2437
      %v2449 = vadd.s32 %v2448, %v2439
      %v2450 = vmul.u32 %v2405, %v2396
      %v2451 = vadd.s32 %v2427, %v2446
      %vm2452 = vc.u32 %v2427, %v2446
      %v2453 = vadd.s32 %v2449, 1
      %v2454 = vsel %vm2452, %v2453, %v2449
      %v2455 = vadd.s32 %v2450, %v2454
      %v2456 = vadd.s32 %v2455, 536870912
      %v2457 = vshrl.u32 %v2456, 30
      %v2458 = vshll.u32 %v2457, 30
      %v2459 = vsub.s32 %v2455, %v2458
      %vm2460 = vcmp.lt.s32.totalorder %v2459, 0
      %v2461 = vsub.s32 0, %v2459
      %v2462 = vsel %vm2460, %v2461, %v2459
      %v2463 = vclz %v2462
      %v2464 = vsub.s32 %v2463, 2
      %vm2465 = vcmp.gt.s32.totalorder 0, %v2464
      %v2466 = vsel %vm2465, 0, %v2464
      %v2467 = vsub.s32 32, %v2466
      %v2468 = vshll.u32 %v2459, %v2466
      %v2469 = vshrl.u32 %v2451, %v2467
      %v2470 = vor.u32 %v2468, %v2469
      %v2471 = vsub.s32 4294967266, %v2466
      %v2472 = vadd.s32 %v2471, 127
      %v2473 = vshll.u32 %v2472, 23
      %v2474 = vor.u32 4788187, %v2473
      %v2475 = vand.u32 2147483647, %v2474
      %v2477 = vcvt.s32.f32 %v2470
      %v2478 = vmul.f32 %v2477, %v2475
      %v2479 = vxor.u32 %v2478, 2147483648
      %v2480 = vsel %vm2359, %v2479, %v2478
      %v2481 = vsub.s32 4, %v2457
      %v2482 = vsel %vm2359, %v2481, %v2457
      %v2483 = vsel %vm2358, %v1584, %v2480
      %v2484 = vsel %vm2358, 0, %v2482
      %v2485 = vmul.f32 %v2483, %v2483
      %v2486 = vmul.f32 %v2485, -0.001358992
      %v2487 = vadd.f32 %v2486, 0.041655596
      %v2488 = vmul.f32 %v2485, %v2487
      %v2489 = vadd.f32 %v2488, -0.4999988
      %v2490 = vmul.f32 %v2485, %v2489
      %v2491 = vadd.f32 1.0, %v2490
      %v2492 = vmul.f32 %v2483, %v2483
      %v2493 = vmul.f32 %v2492, -0.00019511016
      %v2494 = vadd.f32 %v2493, 0.008332121
      %v2495 = vmul.f32 %v2492, %v2494
      %v2496 = vadd.f32 %v2495, -0.16666654
      %v2497 = vmul.f32 %v2492, %v2496
      %v2498 = vadd.f32 %v2497, 1.0
      %v2499 = vmul.f32 %v2498, %v2483
      %vm2500 = vweird.f32 %v1584
      %v2501 = vand.u32 %v2484, 3
      %vm2502 = vcmp.lt.s32.totalorder %v2501, 2
      %vm2503 = vcmp.eq.s32.totalorder %v2501, 0
      %v2504 = vxor.u32 %v2499, 2147483648
      %v2505 = vsel %vm2503, %v2491, %v2504
      %vm2506 = vcmp.eq.s32.totalorder %v2501, 2
      %v2507 = vxor.u32 %v2491, 2147483648
      %v2508 = vsel %vm2506, %v2507, %v2499
      %v2509 = vsel %vm2502, %v2505, %v2508
      %v2510 = vsel %vm2500, nan, %v2509
      %v2511 = vand.u32 2147483647, %v1585
      %vm2512 = vcmp.le.f32.partialorder %v2511, 0.7853982
      %vm2513 = vcmp.lt.s32.totalorder %v1585, 0
      %v2514 = vand.u32 %v1585, 2139095040
      %v2515 = vshrl.u32 %v2514, 23
      %v2516 = vsub.s32 %v2515, 127
      %v2517 = vand.u32 2147483647, %v1585
      %v2518 = vand.u32 %v2517, 8388607
      %v2519 = vor.u32 %v2518, 8388608
      %v2520 = vsub.s32 0, %v2519
      %v2521 = vadd.s32 %v2516, 1
      %vm2522 = vcmp.gt.s32.totalorder %v2521, 0
      %v2523 = vsel %vm2522, %v2521, 0
      %v2524 = vshrl.u32 %v2523, 5
      %v2525 = vand.u32 %v2523, 31
      %v2526 = vsub.s32 32, %v2525
      %v2527 = vshrl.u32 683565275, %v2526
      %v2528 = vshll.u32 683565275, %v2525
      %v2529 = vshrl.u32 2475754826, %v2526
      %v2530 = vor.u32 %v2528, %v2529
      %v2531 = vshll.u32 2475754826, %v2525
      %v2532 = vshrl.u32 2131351028, %v2526
      %v2533 = vor.u32 %v2531, %v2532
      %v2534 = vshll.u32 2131351028, %v2525
      %v2535 = vshrl.u32 2102212464, %v2526
      %v2536 = vor.u32 %v2534, %v2535
      %v2537 = vshll.u32 2102212464, %v2525
      %v2538 = vshrl.u32 920167782, %v2526
      %v2539 = vor.u32 %v2537, %v2538
      %v2540 = vshll.u32 920167782, %v2525
      %v2541 = vshrl.u32 1326507024, %v2526
      %v2542 = vor.u32 %v2540, %v2541
      %vm2543 = vcmp.lt.s32.totalorder %v2524, 1
      %vm2544 = vcmp.lt.s32.totalorder %v2524, 2
      %vm2545 = vcmp.lt.s32.totalorder %v2524, 3
      %vm2546 = vcmp.lt.s32.totalorder %v2524, 4
      %v2547 = vsel %vm2543, %v2527, %v2530
      %v2548 = vsel %vm2546, %v2536, 2102212464
      %v2549 = vsel %vm2545, %v2533, %v2548
      %v2550 = vsel %vm2544, %v2547, %v2549
      %v2551 = vsel %vm2543, %v2530, %v2533
      %v2552 = vsel %vm2546, %v2539, 920167782
      %v2553 = vsel %vm2545, %v2536, %v2552
      %v2554 = vsel %vm2544, %v2551, %v2553
      %v2555 = vsel %vm2543, %v2533, %v2536
      %v2556 = vsel %vm2546, %v2542, 1326507024
      %v2557 = vsel %vm2545, %v2539, %v2556
      %v2558 = vsel %vm2544, %v2555, %v2557
      %v2559 = vshll.u32 %v2519, 8
      %v2560 = vand.u32 %v2559, 65535
      %v2561 = vshrl.u32 %v2559, 16
      %v2562 = vand.u32 %v2558, 65535
      %v2563 = vshrl.u32 %v2558, 16
      %v2564 = vmul.u32 %v2560, %v2562
      %v2565 = vmul.u32 %v2560, %v2563
      %v2566 = vmul.u32 %v2561, %v2562
      %v2567 = vmul.u32 %v2561, %v2563
      %v2568 = vshll.u32 %v2565, 16
      %v2569 = vshrl.u32 %v2565, 16
      %v2570 = vshll.u32 %v2566, 16
      %v2571 = vshrl.u32 %v2566, 16
      %vm2572 = vc.u32 %v2564, %v2568
      %v2573 = vsel %vm2572, 1, 0
      %v2574 = vadd.s32 %v2564, %v2568
      %v2575 = vadd.s32 %v2567, %v2573
      %vm2576 = vc.u32 %v2574, %v2570
      %v2577 = vsel %vm2576, 1, 0
      %v2578 = vadd.s32 %v2574, %v2570
      %v2579 = vadd.s32 %v2575, %v2577
      %v2580 = vadd.s32 %v2579, %v2569
      %v2581 = vadd.s32 %v2580, %v2571
      %v2582 = vand.u32 %v2559, 65535
      %v2583 = vshrl.u32 %v2559, 16
      %v2584 = vand.u32 %v2554, 65535
      %v2585 = vshrl.u32 %v2554, 16
      %v2586 = vmul.u32 %v2582, %v2584
      %v2587 = vmul.u32 %v2582, %v2585
      %v2588 = vmul.u32 %v2583, %v2584
      %v2589 = vmul.u32 %v2583, %v2585
      %v2590 = vshll.u32 %v2587, 16
      %v2591 = vshrl.u32 %v2587, 16
      %v2592 = vshll.u32 %v2588, 16
      %v2593 = vshrl.u32 %v2588, 16
      %vm2594 = vc.u32 %v2586, %v2590
      %v2595 = vsel %vm2594, 1, 0
      %v2596 = vadd.s32 %v2586, %v2590
      %v2597 = vadd.s32 %v2589, %v2595
      %vm2598 = vc.u32 %v2596, %v2592
      %v2599 = vsel %vm2598, 1, 0
      %v2600 = vadd.s32 %v2596, %v2592
      %v2601 = vadd.s32 %v2597, %v2599
      %v2602 = vadd.s32 %v2601, %v2591
      %v2603 = vadd.s32 %v2602, %v2593
      %v2604 = vmul.u32 %v2559, %v2550
      %v2605 = vadd.s32 %v2581, %v2600
      %vm2606 = vc.u32 %v2581, %v2600
      %v2607 = vadd.s32 %v2603, 1
      %v2608 = vsel %vm2606, %v2607, %v2603
      %v2609 = vadd.s32 %v2604, %v2608
      %v2610 = vadd.s32 %v2609, 536870912
      %v2611 = vshrl.u32 %v2610, 30
      %v2612 = vshll.u32 %v2611, 30
      %v2613 = vsub.s32 %v2609, %v2612
      %vm2614 = vcmp.lt.s32.totalorder %v2613, 0
      %v2615 = vsub.s32 0, %v2613
      %v2616 = vsel %vm2614, %v2615, %v2613
      %v2617 = vclz %v2616
      %v2618 = vsub.s32 %v2617, 2
      %vm2619 = vcmp.gt.s32.totalorder 0, %v2618
      %v2620 = vsel %vm2619, 0, %v2618
      %v2621 = vsub.s32 32, %v2620
      %v2622 = vshll.u32 %v2613, %v2620
      %v2623 = vshrl.u32 %v2605, %v2621
      %v2624 = vor.u32 %v2622, %v2623
      %v2625 = vsub.s32 4294967266, %v2620
      %v2626 = vadd.s32 %v2625, 127
      %v2627 = vshll.u32 %v2626, 23
      %v2628 = vor.u32 4788187, %v2627
      %v2629 = vand.u32 2147483647, %v2628
      %v2631 = vcvt.s32.f32 %v2624
      %v2632 = vmul.f32 %v2631, %v2629
      %v2633 = vxor.u32 %v2632, 2147483648
      %v2634 = vsel %vm2513, %v2633, %v2632
      %v2635 = vsub.s32 4, %v2611
      %v2636 = vsel %vm2513, %v2635, %v2611
      %v2637 = vsel %vm2512, %v1585, %v2634
      %v2638 = vsel %vm2512, 0, %v2636
      %v2639 = vmul.f32 %v2637, %v2637
      %v2640 = vmul.f32 %v2639, -0.001358992
      %v2641 = vadd.f32 %v2640, 0.041655596
      %v2642 = vmul.f32 %v2639, %v2641
      %v2643 = vadd.f32 %v2642, -0.4999988
      %v2644 = vmul.f32 %v2639, %v2643
      %v2645 = vadd.f32 1.0, %v2644
      %v2646 = vmul.f32 %v2637, %v2637
      %v2647 = vmul.f32 %v2646, -0.00019511016
      %v2648 = vadd.f32 %v2647, 0.008332121
      %v2649 = vmul.f32 %v2646, %v2648
      %v2650 = vadd.f32 %v2649, -0.16666654
      %v2651 = vmul.f32 %v2646, %v2650
      %v2652 = vadd.f32 %v2651, 1.0
      %v2653 = vmul.f32 %v2652, %v2637
      %vm2654 = vweird.f32 %v1585
      %v2655 = vand.u32 %v2638, 3
      %vm2656 = vcmp.lt.s32.totalorder %v2655, 2
      %vm2657 = vcmp.eq.s32.totalorder %v2655, 0
      %v2658 = vxor.u32 %v2653, 2147483648
      %v2659 = vsel %vm2657, %v2645, %v2658
      %vm2660 = vcmp.eq.s32.totalorder %v2655, 2
      %v2661 = vxor.u32 %v2645, 2147483648
      %v2662 = vsel %vm2660, %v2661, %v2653
      %v2663 = vsel %vm2656, %v2659, %v2662
      %v2664 = vsel %vm2654, nan, %v2663
      %v2665 = vand.u32 2147483647, %v1586
      %vm2666 = vcmp.le.f32.partialorder %v2665, 0.7853982
      %vm2667 = vcmp.lt.s32.totalorder %v1586, 0
      %v2668 = vand.u32 %v1586, 2139095040
      %v2669 = vshrl.u32 %v2668, 23
      %v2670 = vsub.s32 %v2669, 127
      %v2671 = vand.u32 2147483647, %v1586
      %v2672 = vand.u32 %v2671, 8388607
      %v2673 = vor.u32 %v2672, 8388608
      %v2674 = vsub.s32 0, %v2673
      %v2675 = vadd.s32 %v2670, 1
      %vm2676 = vcmp.gt.s32.totalorder %v2675, 0
      %v2677 = vsel %vm2676, %v2675, 0
      %v2678 = vshrl.u32 %v2677, 5
      %v2679 = vand.u32 %v2677, 31
      %v2680 = vsub.s32 32, %v2679
      %v2681 = vshrl.u32 683565275, %v2680
      %v2682 = vshll.u32 683565275, %v2679
      %v2683 = vshrl.u32 2475754826, %v2680
      %v2684 = vor.u32 %v2682, %v2683
      %v2685 = vshll.u32 2475754826, %v2679
      %v2686 = vshrl.u32 2131351028, %v2680
      %v2687 = vor.u32 %v2685, %v2686
      %v2688 = vshll.u32 2131351028, %v2679
      %v2689 = vshrl.u32 2102212464, %v2680
      %v2690 = vor.u32 %v2688, %v2689
      %v2691 = vshll.u32 2102212464, %v2679
      %v2692 = vshrl.u32 920167782, %v2680
      %v2693 = vor.u32 %v2691, %v2692
      %v2694 = vshll.u32 920167782, %v2679
      %v2695 = vshrl.u32 1326507024, %v2680
      %v2696 = vor.u32 %v2694, %v2695
      %vm2697 = vcmp.lt.s32.totalorder %v2678, 1
      %vm2698 = vcmp.lt.s32.totalorder %v2678, 2
      %vm2699 = vcmp.lt.s32.totalorder %v2678, 3
      %vm2700 = vcmp.lt.s32.totalorder %v2678, 4
      %v2701 = vsel %vm2697, %v2681, %v2684
      %v2702 = vsel %vm2700, %v2690, 2102212464
      %v2703 = vsel %vm2699, %v2687, %v2702
      %v2704 = vsel %vm2698, %v2701, %v2703
      %v2705 = vsel %vm2697, %v2684, %v2687
      %v2706 = vsel %vm2700, %v2693, 920167782
      %v2707 = vsel %vm2699, %v2690, %v2706
      %v2708 = vsel %vm2698, %v2705, %v2707
      %v2709 = vsel %vm2697, %v2687, %v2690
      %v2710 = vsel %vm2700, %v2696, 1326507024
      %v2711 = vsel %vm2699, %v2693, %v2710
      %v2712 = vsel %vm2698, %v2709, %v2711
      %v2713 = vshll.u32 %v2673, 8
      %v2714 = vand.u32 %v2713, 65535
      %v2715 = vshrl.u32 %v2713, 16
      %v2716 = vand.u32 %v2712, 65535
      %v2717 = vshrl.u32 %v2712, 16
      %v2718 = vmul.u32 %v2714, %v2716
      %v2719 = vmul.u32 %v2714, %v2717
      %v2720 = vmul.u32 %v2715, %v2716
      %v2721 = vmul.u32 %v2715, %v2717
      %v2722 = vshll.u32 %v2719, 16
      %v2723 = vshrl.u32 %v2719, 16
      %v2724 = vshll.u32 %v2720, 16
      %v2725 = vshrl.u32 %v2720, 16
      %vm2726 = vc.u32 %v2718, %v2722
      %v2727 = vsel %vm2726, 1, 0
      %v2728 = vadd.s32 %v2718, %v2722
      %v2729 = vadd.s32 %v2721, %v2727
      %vm2730 = vc.u32 %v2728, %v2724
      %v2731 = vsel %vm2730, 1, 0
      %v2732 = vadd.s32 %v2728, %v2724
      %v2733 = vadd.s32 %v2729, %v2731
      %v2734 = vadd.s32 %v2733, %v2723
      %v2735 = vadd.s32 %v2734, %v2725
      %v2736 = vand.u32 %v2713, 65535
      %v2737 = vshrl.u32 %v2713, 16
      %v2738 = vand.u32 %v2708, 65535
      %v2739 = vshrl.u32 %v2708, 16
      %v2740 = vmul.u32 %v2736, %v2738
      %v2741 = vmul.u32 %v2736, %v2739
      %v2742 = vmul.u32 %v2737, %v2738
      %v2743 = vmul.u32 %v2737, %v2739
      %v2744 = vshll.u32 %v2741, 16
      %v2745 = vshrl.u32 %v2741, 16
      %v2746 = vshll.u32 %v2742, 16
      %v2747 = vshrl.u32 %v2742, 16
      %vm2748 = vc.u32 %v2740, %v2744
      %v2749 = vsel %vm2748, 1, 0
      %v2750 = vadd.s32 %v2740, %v2744
      %v2751 = vadd.s32 %v2743, %v2749
      %vm2752 = vc.u32 %v2750, %v2746
      %v2753 = vsel %vm2752, 1, 0
      %v2754 = vadd.s32 %v2750, %v2746
      %v2755 = vadd.s32 %v2751, %v2753
      %v2756 = vadd.s32 %v2755, %v2745
      %v2757 = vadd.s32 %v2756, %v2747
      %v2758 = vmul.u32 %v2713, %v2704
      %v2759 = vadd.s32 %v2735, %v2754
      %vm2760 = vc.u32 %v2735, %v2754
      %v2761 = vadd.s32 %v2757, 1
      %v2762 = vsel %vm2760, %v2761, %v2757
      %v2763 = vadd.s32 %v2758, %v2762
      %v2764 = vadd.s32 %v2763, 536870912
      %v2765 = vshrl.u32 %v2764, 30
      %v2766 = vshll.u32 %v2765, 30
      %v2767 = vsub.s32 %v2763, %v2766
      %vm2768 = vcmp.lt.s32.totalorder %v2767, 0
      %v2769 = vsub.s32 0, %v2767
      %v2770 = vsel %vm2768, %v2769, %v2767
      %v2771 = vclz %v2770
      %v2772 = vsub.s32 %v2771, 2
      %vm2773 = vcmp.gt.s32.totalorder 0, %v2772
      %v2774 = vsel %vm2773, 0, %v2772
      %v2775 = vsub.s32 32, %v2774
      %v2776 = vshll.u32 %v2767, %v2774
      %v2777 = vshrl.u32 %v2759, %v2775
      %v2778 = vor.u32 %v2776, %v2777
      %v2779 = vsub.s32 4294967266, %v2774
      %v2780 = vadd.s32 %v2779, 127
      %v2781 = vshll.u32 %v2780, 23
      %v2782 = vor.u32 4788187, %v2781
      %v2783 = vand.u32 2147483647, %v2782
      %v2785 = vcvt.s32.f32 %v2778
      %v2786 = vmul.f32 %v2785, %v2783
      %v2787 = vxor.u32 %v2786, 2147483648
      %v2788 = vsel %vm2667, %v2787, %v2786
      %v2789 = vsub.s32 4, %v2765
      %v2790 = vsel %vm2667, %v2789, %v2765
      %v2791 = vsel %vm2666, %v1586, %v2788
      %v2792 = vsel %vm2666, 0, %v2790
      %v2793 = vmul.f32 %v2791, %v2791
      %v2794 = vmul.f32 %v2793, -0.001358992
      %v2795 = vadd.f32 %v2794, 0.041655596
      %v2796 = vmul.f32 %v2793, %v2795
      %v2797 = vadd.f32 %v2796, -0.4999988
      %v2798 = vmul.f32 %v2793, %v2797
      %v2799 = vadd.f32 1.0, %v2798
      %v2800 = vmul.f32 %v2791, %v2791
      %v2801 = vmul.f32 %v2800, -0.00019511016
      %v2802 = vadd.f32 %v2801, 0.008332121
      %v2803 = vmul.f32 %v2800, %v2802
      %v2804 = vadd.f32 %v2803, -0.16666654
      %v2805 = vmul.f32 %v2800, %v2804
      %v2806 = vadd.f32 %v2805, 1.0
      %v2807 = vmul.f32 %v2806, %v2791
      %vm2808 = vweird.f32 %v1586
      %v2809 = vand.u32 %v2792, 3
      %vm2810 = vcmp.lt.s32.totalorder %v2809, 2
      %vm2811 = vcmp.eq.s32.totalorder %v2809, 0
      %v2812 = vxor.u32 %v2807, 2147483648
      %v2813 = vsel %vm2811, %v2799, %v2812
      %vm2814 = vcmp.eq.s32.totalorder %v2809, 2
      %v2815 = vxor.u32 %v2799, 2147483648
      %v2816 = vsel %vm2814, %v2815, %v2807
      %v2817 = vsel %vm2810, %v2813, %v2816
      %v2818 = vsel %vm2808, nan, %v2817
      %v2819 = vld [vmem:[%s2] sm:$0xff]
      %v2820 = vld [vmem:[%s2 + $0x8] sm:$0xff]
      %v2821 = vld [vmem:[%s2 + $0x10] sm:$0xff]
      %v2822 = vld [vmem:[%s2 + $0x18] sm:$0xff]
      %v2823 = vld [vmem:[%s2 + $0x20] sm:$0xff]
      %v2824 = vld [vmem:[%s2 + $0x28] sm:$0xff]
      %v2825 = vld [vmem:[%s2 + $0x30] sm:$0xff]
      %v2826 = vld [vmem:[%s2 + $0x38] sm:$0xff]
      %v2827 = vld [vmem:[%s2 + $0x40] sm:$0x3]
      %v2828 = vld [vmem:[%s3] sm:$0xff]
      %v2829 = vld [vmem:[%s3 + $0x8] sm:$0xff]
      %v2830 = vld [vmem:[%s3 + $0x10] sm:$0xff]
      %v2831 = vld [vmem:[%s3 + $0x18] sm:$0xff]
      %vm2832 = vcmask 261120
      %v2834 = vsel %vm2832, %v468, 0
      %v2837 = vsel %vm2832, %v622, 0
      %v2840 = vsel %vm2832, %v776, 0
      %v2843 = vsel %vm2832, %v930, 0
      %v2846 = vsel %vm2832, %v1084, 0
      %v2849 = vsel %vm2832, %v1238, 0
      %v2852 = vsel %vm2832, %v1392, 0
      %v2855 = vsel %vm2832, %v1546, 0
      %2857 = vmatpush.msra.mxu0 0.0
      %2858 = vmatpush.msra.mxu0 0.0
      %2859 = vmatpush.msra.mxu0 0.0
      %2860 = vmatpush.msra.mxu0 0.0
      %2861 = vmatpush.msra.mxu0 0.0
      %2862 = vmatpush.msra.mxu0 0.0
      %2863 = vmatpush.msra.mxu0 0.0
      %2864 = vmatpush.msra.mxu0 0.0
      %2865 = vmatpush.msra.mxu0 0.0
      %2866 = vmatpush.msra.mxu0 0.0
      %2867 = vmatpush.msra.mxu0 0.0
      %2868 = vmatpush.msra.mxu0 0.0
      %2869 = vmatpush.msra.mxu0 %v2831
      %2870 = vmatpush.msra.mxu0 %v2830
      %2871 = vmatpush.msra.mxu0 %v2829
      %2872 = vmatpush.msra.mxu0 %v2828
      %2873 = vmatmul.f32.gmra.mxu0 %v2834
      %v2874 = vpop.f32.mrf.mxu0
      %v2875 = vadd.f32 0.0, %v2874
      %2876 = vmatmul.f32.gmra.mxu0 %v2837
      %v2877 = vpop.f32.mrf.mxu0
      %v2878 = vadd.f32 0.0, %v2877
      %2879 = vmatmul.f32.gmra.mxu0 %v2840
      %v2880 = vpop.f32.mrf.mxu0
      %v2881 = vadd.f32 0.0, %v2880
      %2882 = vmatmul.f32.gmra.mxu0 %v2843
      %v2883 = vpop.f32.mrf.mxu0
      %v2884 = vadd.f32 0.0, %v2883
      %2885 = vmatmul.f32.gmra.mxu0 %v2846
      %v2886 = vpop.f32.mrf.mxu0
      %v2887 = vadd.f32 0.0, %v2886
      %2888 = vmatmul.f32.gmra.mxu0 %v2849
      %v2889 = vpop.f32.mrf.mxu0
      %v2890 = vadd.f32 0.0, %v2889
      %2891 = vmatmul.f32.gmra.mxu0 %v2852
      %v2892 = vpop.f32.mrf.mxu0
      %v2893 = vadd.f32 0.0, %v2892
      %2894 = vmatmul.f32.gmra.mxu0 %v2855
      %v2895 = vpop.f32.mrf.mxu0
      %v2896 = vadd.f32 0.0, %v2895
      %2897 = vdwg.mxu0
      %vm2898 = vcmask 539648
      %v2899 = vsel %vm2898, %v255, 0
      %v2901 = vsel %vm2898, %v256, 0
      %v2903 = vsel %vm2898, %v257, 0
      %v2905 = vsel %vm2898, %v258, 0
      %v2907 = vsel %vm2898, %v259, 0
      %v2909 = vsel %vm2898, %v260, 0
      %v2911 = vsel %vm2898, %v261, 0
      %v2913 = vsel %vm2898, %v262, 0
      %vm2915 = vcmask 1041408
      %v2917 = vsel %vm2915, %v2827, 0
      %2919 = vmatpush.msra.mxu0 0.0
      %2920 = vmatpush.msra.mxu0 0.0
      %2921 = vmatpush.msra.mxu0 0.0
      %2922 = vmatpush.msra.mxu0 0.0
      %2923 = vmatpush.msra.mxu0 0.0
      %2924 = vmatpush.msra.mxu0 0.0
      %2925 = vmatpush.msra.mxu0 0.0
      %2926 = vmatpush.msra.mxu0 %v2917
      %2927 = vmatpush.msra.mxu0 %v2826
      %2928 = vmatpush.msra.mxu0 %v2825
      %2929 = vmatpush.msra.mxu0 %v2824
      %2930 = vmatpush.msra.mxu0 %v2823
      %2931 = vmatpush.msra.mxu0 %v2822
      %2932 = vmatpush.msra.mxu0 %v2821
      %2933 = vmatpush.msra.mxu0 %v2820
      %2934 = vmatpush.msra.mxu0 %v2819
      %2935 = vmatmul.f32.gmra.mxu0 %v2899
      %v2936 = vpop.f32.mrf.mxu0
      %v2937 = vadd.f32 %v2875, %v2936
      %2938 = vmatmul.f32.gmra.mxu0 %v2901
      %v2939 = vpop.f32.mrf.mxu0
      %v2940 = vadd.f32 %v2878, %v2939
      %2941 = vmatmul.f32.gmra.mxu0 %v2903
      %v2942 = vpop.f32.mrf.mxu0
      %v2943 = vadd.f32 %v2881, %v2942
      %2944 = vmatmul.f32.gmra.mxu0 %v2905
      %v2945 = vpop.f32.mrf.mxu0
      %v2946 = vadd.f32 %v2884, %v2945
      %2947 = vmatmul.f32.gmra.mxu0 %v2907
      %v2948 = vpop.f32.mrf.mxu0
      %v2949 = vadd.f32 %v2887, %v2948
      %2950 = vmatmul.f32.gmra.mxu0 %v2909
      %v2951 = vpop.f32.mrf.mxu0
      %v2952 = vadd.f32 %v2890, %v2951
      %2953 = vmatmul.f32.gmra.mxu0 %v2911
      %v2954 = vpop.f32.mrf.mxu0
      %v2955 = vadd.f32 %v2893, %v2954
      %2956 = vmatmul.f32.gmra.mxu0 %v2913
      %v2957 = vpop.f32.mrf.mxu0
      %v2958 = vadd.f32 %v2896, %v2957
      %2959 = vdwg.mxu0
      %v2960 = vld [vmem:[%s4] sm:$0xff]
      %v2961 = vld [vmem:[%s4 + $0x8] sm:$0xff]
      %v2962 = vld [vmem:[%s4 + $0x10] sm:$0xff]
      %v2963 = vld [vmem:[%s4 + $0x18] sm:$0xff]
      %v2965 = vsel %vm2832, %v1740, 0
      %v2968 = vsel %vm2832, %v1894, 0
      %v2971 = vsel %vm2832, %v2048, 0
      %v2974 = vsel %vm2832, %v2202, 0
      %v2977 = vsel %vm2832, %v2356, 0
      %v2980 = vsel %vm2832, %v2510, 0
      %v2983 = vsel %vm2832, %v2664, 0
      %v2986 = vsel %vm2832, %v2818, 0
      %2988 = vmatpush.msra.mxu0 0.0
      %2989 = vmatpush.msra.mxu0 0.0
      %2990 = vmatpush.msra.mxu0 0.0
      %2991 = vmatpush.msra.mxu0 0.0
      %2992 = vmatpush.msra.mxu0 0.0
      %2993 = vmatpush.msra.mxu0 0.0
      %2994 = vmatpush.msra.mxu0 0.0
      %2995 = vmatpush.msra.mxu0 0.0
      %2996 = vmatpush.msra.mxu0 0.0
      %2997 = vmatpush.msra.mxu0 0.0
      %2998 = vmatpush.msra.mxu0 0.0
      %2999 = vmatpush.msra.mxu0 0.0
      %3000 = vmatpush.msra.mxu0 %v2963
      %3001 = vmatpush.msra.mxu0 %v2962
      %3002 = vmatpush.msra.mxu0 %v2961
      %3003 = vmatpush.msra.mxu0 %v2960
      %3004 = vmatmul.f32.gmra.mxu0 %v2965
      %v3005 = vpop.f32.mrf.mxu0
      %v3006 = vadd.f32 0.0, %v3005
      %3007 = vmatmul.f32.gmra.mxu0 %v2968
      %v3008 = vpop.f32.mrf.mxu0
      %v3009 = vadd.f32 0.0, %v3008
      %3010 = vmatmul.f32.gmra.mxu0 %v2971
      %v3011 = vpop.f32.mrf.mxu0
      %v3012 = vadd.f32 0.0, %v3011
      %3013 = vmatmul.f32.gmra.mxu0 %v2974
      %v3014 = vpop.f32.mrf.mxu0
      %v3015 = vadd.f32 0.0, %v3014
      %3016 = vmatmul.f32.gmra.mxu0 %v2977
      %v3017 = vpop.f32.mrf.mxu0
      %v3018 = vadd.f32 0.0, %v3017
      %3019 = vmatmul.f32.gmra.mxu0 %v2980
      %v3020 = vpop.f32.mrf.mxu0
      %v3021 = vadd.f32 0.0, %v3020
      %3022 = vmatmul.f32.gmra.mxu0 %v2983
      %v3023 = vpop.f32.mrf.mxu0
      %v3024 = vadd.f32 0.0, %v3023
      %3025 = vmatmul.f32.gmra.mxu0 %v2986
      %v3026 = vpop.f32.mrf.mxu0
      %v3027 = vadd.f32 0.0, %v3026
      %3028 = vdwg.mxu0
      %v3029 = vadd.f32 %v2937, %v3006
      %v3030 = vadd.f32 %v2940, %v3009
      %v3031 = vadd.f32 %v2943, %v3012
      %v3032 = vadd.f32 %v2946, %v3015
      %v3033 = vadd.f32 %v2949, %v3018
      %v3034 = vadd.f32 %v2952, %v3021
      %v3035 = vadd.f32 %v2955, %v3024
      %v3036 = vadd.f32 %v2958, %v3027
      %v3037 = vld [vmem:[%s5] sm:$0x1]
      %v3039 = vperm.slane %v3037, 0
      %v3041 = vadd.f32 %v3029, %v3039
      %v3042 = vadd.f32 %v3030, %v3039
      %v3043 = vadd.f32 %v3031, %v3039
      %v3044 = vadd.f32 %v3032, %v3039
      %v3045 = vadd.f32 %v3033, %v3039
      %v3046 = vadd.f32 %v3034, %v3039
      %v3047 = vadd.f32 %v3035, %v3039
      %v3048 = vadd.f32 %v3036, %v3039
      %3049 = vst [vmem:[%s253] sm:$0xff] %v3041
      %3050 = vst [vmem:[%s253 + $0x8] sm:$0xff] %v3042
      %3051 = vst [vmem:[%s253 + $0x10] sm:$0xff] %v3043
      %3052 = vst [vmem:[%s253 + $0x18] sm:$0xff] %v3044
      %3053 = vst [vmem:[%s253 + $0x20] sm:$0xff] %v3045
      %3054 = vst [vmem:[%s253 + $0x28] sm:$0xff] %v3046
      %3055 = vst [vmem:[%s253 + $0x30] sm:$0xff] %v3047
      %3056 = vst [vmem:[%s253 + $0x38] sm:$0xff] %v3048
      %s3057 = smul.u32 8, %s17
      %p3058 = scmp.lt.s32.totalorder %s3057, 15
      %s3059 = scalar_select %p3058, %s3057, 15
      %s3060 = smul.addr %s3059, 8
      %s3061 = scalar_lea.vmem %s6, %s3060
      // Predicated region
      $region45: #{feat_encode.1} parent=43 // pred_check
        %p3062 = pneg %p166
      $region46: #{feat_encode.1} parent=43 // pred_check_branch
        %3064 = sbr.rel (%p3062) target = $region48
      $region47: #{feat_encode.1} parent=43 // pred_region
        %s3065 = smul.u32 8, %s17
      $region48: #{feat_encode.1} parent=43 // pred_fallthru
        _
    $region44: #{feat_encode.1} parent=5 // pred_fallthru
      _
    %p3066 = scmp.le.s32.totalorder 2, %s12
    // Predicated region
    $region49: #{feat_encode.1} parent=5 // pred_check
      %p3067 = pneg %p3066
    $region50: #{feat_encode.1} parent=5 // pred_check_branch
      %3069 = sbr.rel (%p3067) target = $region52
    $region51: #{feat_encode.1} parent=5 // pred_region
      %s3070 = ssub.s32 %s12, 2
      // Predicated region
      $region53: #{feat_encode.1} parent=51 // pred_check
        %p3071 = pneg %p172
      $region54: #{feat_encode.1} parent=51 // pred_check_branch
        %3073 = sbr.rel (%p3071) target = $region56
      $region55: #{feat_encode.1} parent=51 // pred_region
        %s3074 = smul.u32 8, %s18
        %p3075 = scmp.lt.s32.totalorder %s3074, 15
        %s3076 = scalar_select %p3075, %s3074, 15
        %s3077 = smul.addr %s3076, 8
        %s3078 = scalar_lea.vmem %s6, %s3077
      $region56: #{feat_encode.1} parent=51 // pred_fallthru
        _
    $region52: #{feat_encode.1} parent=5 // pred_fallthru
      _
  $region6: #{feat_encode.1} parent=0 // loop_footer
    %s16 = sadd.s32 1, %s12
  $region7: #{feat_encode.1} parent=0 // loop_footer_branch
    %11 = sbr.rel target = $region3
  $region8: #{feat_encode.1} parent=0 // loop_exit
    _

</llo_original>
